<compile_context>
chip_gen: v6e
topology: v6e:2x2x1
jax: 0.10.0
libtpu: 0.0.40
codegen_flags: <defaults>
</compile_context>

<pallas_src>
from functools import partial

import jax
import jax.numpy as jnp
from jax.experimental import pallas as pl
from jax.experimental.pallas import tpu as pltpu  # noqa: F401  (TPU memory-space / params if needed)

# Problem sizes (consistent with the module: seq_q=4, seq_k=5, d_in=10).
B, H = 2, 3
SQ, SK = 4, 5
DIN = 10
DQK = 5      # shared q/k projection dim (see TODO above)
DV = 6
DOUT = 10
DROPOUT_P = 0.5


def _attn_kernel(q_in, k_in, v_in, u_in,                 # (N*Sq,Din), (N*Sk,Din), (N*Sk,Din), (N,Sq,Sk)
                 wq, bq, wk, bk, wv, bv, wo, bo,          # weights / biases (full tiles)
                 o_ref,                                   # (N*Sq, Dout)
                 *, n, sq, sk, dk, dropout_p):
    # --- Linear projections: one MXU pass each over the flattened slabs -----------
    q = jnp.dot(q_in[...], wq[...], preferred_element_type=jnp.float32) + bq[...]
    k = jnp.dot(k_in[...], wk[...], preferred_element_type=jnp.float32) + bk[...]
    v = jnp.dot(v_in[...], wv[...], preferred_element_type=jnp.float32) + bv[...]

    q = q.reshape(n, sq, q.shape[-1])
    k = k.reshape(n, sk, k.shape[-1])
    v = v.reshape(n, sk, v.shape[-1])

    # --- scaled q @ k^T (contract last dims directly, no explicit transpose) ------
    qk = jnp.einsum('nqf,nkf->nqk', q, k,
                    preferred_element_type=jnp.float32) * dk

    # --- softmax over keys (numerically stable) ------------------------------------
    m = jnp.max(qk, axis=-1, keepdims=True)
    e = jnp.exp(qk - m)
    p = e / jnp.sum(e, axis=-1, keepdims=True)

    # --- dropout (inverted scaling) on host-provided uniforms ----------------------
    keep = u_in[...] >= dropout_p
    p = jnp.where(keep, p * (1.0 / (1.0 - dropout_p)), 0.0)

    # --- attention context + output projection (single MXU pass) -------------------
    ctx = jnp.einsum('nqk,nkf->nqf', p, v, preferred_element_type=jnp.float32)
    ctx = ctx.reshape(n * sq, ctx.shape[-1])
    o_ref[...] = jnp.dot(ctx, wo[...], preferred_element_type=jnp.float32) + bo[...]


def model_forward(query, key, value, params, dropout_p=DROPOUT_P, seed=0):
    """query: (B,H,Sq,10)  key/value: (B,H,Sk,10)  ->  (B,H,Sq,10)"""
    Bq, Hq, Sq, Din = query.shape
    Sk = key.shape[2]
    N = Bq * Hq

    wq, bq, wk, bk, wv, bv, wo, bo = params
    dout = wo.shape[1]

    # dk = q.size(2) * q.size(3) / key.size(2) * key.size(-1) ** (-0.5)
    #   q.size(3) -> projected q dim (wq.shape[1]); key.size(-1) -> raw input dim.
    dk = float(Sq * wq.shape[1] / Sk * (key.shape[-1] ** -0.5))

    qf = query.reshape(N * Sq, Din)
    kf = key.reshape(N * Sk, Din)
    vf = value.reshape(N * Sk, Din)

    # Dropout randomness generated host-side (deterministic in `seed`); the TPU
    # hardware PRNG has no interpret/CPU lowering in this environment.
    u = jax.random.uniform(jax.random.PRNGKey(seed), (N, Sq, Sk), dtype=jnp.float32)

    kernel = partial(_attn_kernel, n=N, sq=Sq, sk=Sk,
                     dk=dk, dropout_p=float(dropout_p))

    def full_spec(arr):
        nd = arr.ndim
        return pl.BlockSpec(arr.shape, lambda *_, _nd=nd: (0,) * _nd)

    out = pl.pallas_call(
        kernel,
        out_shape=jax.ShapeDtypeStruct((N * Sq, dout), jnp.float32),
        # No grid: a single invocation processes all B*H heads (data is a few KB,
        # so per-grid-step pipeline overhead would dominate otherwise).
        in_specs=[full_spec(a) for a in
                  (qf, kf, vf, u, wq, bq, wk, bk, wv, bv, wo, bo)],
        out_specs=pl.BlockSpec((N * Sq, dout), lambda *_: (0, 0)),
    )(qf, kf, vf, u, wq, bq, wk, bk, wv, bv, wo, bo)

    return out.reshape(Bq, Hq, Sq, dout)


if __name__ == "__main__":
    root = jax.random.PRNGKey(0)
    ks = jax.random.split(root, 12)

    def linear_init(kw, kb, fan_in, fan_out):
        bound = 1.0 / (fan_in ** 0.5)
        w = jax.random.uniform(kw, (fan_in, fan_out), jnp.float32, -bound, bound)
        b = jax.random.uniform(kb, (1, fan_out), jnp.float32, -bound, bound)
        return w, b

    wq, bq = linear_init(ks[0], ks[1], DIN, DQK)
    wk, bk = linear_init(ks[2], ks[3], DIN, DQK)
    wv, bv = linear_init(ks[4], ks[5], DIN, DV)
    wo, bo = linear_init(ks[6], ks[7], DV, DOUT)
    params = (wq, bq, wk, bk, wv, bv, wo, bo)

    query = jax.random.normal(ks[8], (B, H, SQ, DIN), dtype=jnp.float32)
    key_t = jax.random.normal(ks[9], (B, H, SK, DIN), dtype=jnp.float32)
    value = jax.random.normal(ks[10], (B, H, SK, DIN), dtype=jnp.float32)

    out = model_forward(query, key_t, value, params, dropout_p=DROPOUT_P, seed=0)
    jax.block_until_ready(out)
    assert out.shape == (B, H, SQ, DOUT), out.shape
    assert bool(jnp.all(jnp.isfinite(out)))
    print("KERNEL_OK")
</pallas_src>

<mosaic_0001>
module attributes {stable_mosaic.version = 11 : i64} {
  func.func @_attn_kernel(%arg0: memref<24x10xf32, #tpu.memory_space<vmem>>, %arg1: memref<30x10xf32, #tpu.memory_space<vmem>>, %arg2: memref<30x10xf32, #tpu.memory_space<vmem>>, %arg3: memref<6x4x5xf32, #tpu.memory_space<vmem>>, %arg4: memref<10x5xf32, #tpu.memory_space<vmem>>, %arg5: memref<1x5xf32, #tpu.memory_space<vmem>>, %arg6: memref<10x5xf32, #tpu.memory_space<vmem>>, %arg7: memref<1x5xf32, #tpu.memory_space<vmem>>, %arg8: memref<10x6xf32, #tpu.memory_space<vmem>>, %arg9: memref<1x6xf32, #tpu.memory_space<vmem>>, %arg10: memref<6x10xf32, #tpu.memory_space<vmem>>, %arg11: memref<1x10xf32, #tpu.memory_space<vmem>>, %arg12: memref<24x10xf32, #tpu.memory_space<vmem>>) attributes {dimension_semantics = [], scalar_prefetch = 0 : i64, scratch_operands = 0 : i64, tpu.core_type = #tpu.core_type<tc>} {
    %c0 = arith.constant 0 : index
    %c0_0 = arith.constant 0 : index
    %0 = vector.load %arg0[%c0, %c0_0] : memref<24x10xf32, #tpu.memory_space<vmem>>, vector<24x10xf32>
    %c0_1 = arith.constant 0 : index
    %c0_2 = arith.constant 0 : index
    %1 = vector.load %arg4[%c0_1, %c0_2] : memref<10x5xf32, #tpu.memory_space<vmem>>, vector<10x5xf32>
    %cst = arith.constant dense<0.000000e+00> : vector<24x5xf32>
    %2 = tpu.matmul %0, %1, %cst {dimension_numbers = #tpu.dot_dimension_numbers<[1], [0], [0], [1], [0, 0, 1, 1], [], []>} : vector<24x10xf32>, vector<10x5xf32>, vector<24x5xf32> -> vector<24x5xf32>
    %c0_3 = arith.constant 0 : index
    %c0_4 = arith.constant 0 : index
    %3 = vector.load %arg5[%c0_3, %c0_4] : memref<1x5xf32, #tpu.memory_space<vmem>>, vector<1x5xf32>
    %4 = vector.broadcast %3 : vector<1x5xf32> to vector<24x5xf32>
    %5 = arith.addf %2, %4 : vector<24x5xf32>
    %c0_5 = arith.constant 0 : index
    %c0_6 = arith.constant 0 : index
    %6 = vector.load %arg1[%c0_5, %c0_6] : memref<30x10xf32, #tpu.memory_space<vmem>>, vector<30x10xf32>
    %c0_7 = arith.constant 0 : index
    %c0_8 = arith.constant 0 : index
    %7 = vector.load %arg6[%c0_7, %c0_8] : memref<10x5xf32, #tpu.memory_space<vmem>>, vector<10x5xf32>
    %cst_9 = arith.constant dense<0.000000e+00> : vector<30x5xf32>
    %8 = tpu.matmul %6, %7, %cst_9 {dimension_numbers = #tpu.dot_dimension_numbers<[1], [0], [0], [1], [0, 0, 1, 1], [], []>} : vector<30x10xf32>, vector<10x5xf32>, vector<30x5xf32> -> vector<30x5xf32>
    %c0_10 = arith.constant 0 : index
    %c0_11 = arith.constant 0 : index
    %9 = vector.load %arg7[%c0_10, %c0_11] : memref<1x5xf32, #tpu.memory_space<vmem>>, vector<1x5xf32>
    %10 = vector.broadcast %9 : vector<1x5xf32> to vector<30x5xf32>
    %11 = arith.addf %8, %10 : vector<30x5xf32>
    %c0_12 = arith.constant 0 : index
    %c0_13 = arith.constant 0 : index
    %12 = vector.load %arg2[%c0_12, %c0_13] : memref<30x10xf32, #tpu.memory_space<vmem>>, vector<30x10xf32>
    %c0_14 = arith.constant 0 : index
    %c0_15 = arith.constant 0 : index
    %13 = vector.load %arg8[%c0_14, %c0_15] : memref<10x6xf32, #tpu.memory_space<vmem>>, vector<10x6xf32>
    %cst_16 = arith.constant dense<0.000000e+00> : vector<30x6xf32>
    %14 = tpu.matmul %12, %13, %cst_16 {dimension_numbers = #tpu.dot_dimension_numbers<[1], [0], [0], [1], [0, 0, 1, 1], [], []>} : vector<30x10xf32>, vector<10x6xf32>, vector<30x6xf32> -> vector<30x6xf32>
    %c0_17 = arith.constant 0 : index
    %c0_18 = arith.constant 0 : index
    %15 = vector.load %arg9[%c0_17, %c0_18] : memref<1x6xf32, #tpu.memory_space<vmem>>, vector<1x6xf32>
    %16 = vector.broadcast %15 : vector<1x6xf32> to vector<30x6xf32>
    %17 = arith.addf %14, %16 : vector<30x6xf32>
    %18 = vector.shape_cast %5 : vector<24x5xf32> to vector<6x4x5xf32>
    %19 = vector.shape_cast %11 : vector<30x5xf32> to vector<6x5x5xf32>
    %20 = vector.shape_cast %17 : vector<30x6xf32> to vector<6x5x6xf32>
    "tpu.trace_start"() <{level = 10 : i32, message = "nqf,nkf->nqk"}> : () -> ()
    %cst_19 = arith.constant dense<0.000000e+00> : vector<6x4x5xf32>
    %21 = tpu.matmul %18, %19, %cst_19 {dimension_numbers = #tpu.dot_dimension_numbers<[2], [2], [1], [1], [0, 0, 0, 1, 1, 1], [0], [0]>} : vector<6x4x5xf32>, vector<6x5x5xf32>, vector<6x4x5xf32> -> vector<6x4x5xf32>
    "tpu.trace_stop"() : () -> ()
    %cst_20 = arith.constant 1.26491106 : f32
    %22 = vector.broadcast %cst_20 : f32 to vector<6x4x5xf32>
    %23 = arith.mulf %21, %22 : vector<6x4x5xf32>
    %cst_21 = arith.constant dense<0xFF800000> : vector<6x4xf32>
    %24 = vector.multi_reduction <maximumf>, %23, %cst_21 [2] : vector<6x4x5xf32> to vector<6x4xf32>
    %25 = vector.shape_cast %24 : vector<6x4xf32> to vector<6x4x1xf32>
    %26 = vector.broadcast %25 : vector<6x4x1xf32> to vector<6x4x5xf32>
    %27 = arith.subf %23, %26 : vector<6x4x5xf32>
    %28 = math.exp %27 : vector<6x4x5xf32>
    %cst_22 = arith.constant dense<0.000000e+00> : vector<6x4xf32>
    %29 = vector.multi_reduction <add>, %28, %cst_22 [2] : vector<6x4x5xf32> to vector<6x4xf32>
    %30 = vector.shape_cast %29 : vector<6x4xf32> to vector<6x4x1xf32>
    %31 = vector.broadcast %30 : vector<6x4x1xf32> to vector<6x4x5xf32>
    %32 = arith.divf %28, %31 : vector<6x4x5xf32>
    %c0_23 = arith.constant 0 : index
    %c0_24 = arith.constant 0 : index
    %c0_25 = arith.constant 0 : index
    %33 = vector.load %arg3[%c0_23, %c0_24, %c0_25] : memref<6x4x5xf32, #tpu.memory_space<vmem>>, vector<6x4x5xf32>
    %cst_26 = arith.constant 5.000000e-01 : f32
    %34 = vector.broadcast %cst_26 : f32 to vector<6x4x5xf32>
    %35 = arith.cmpf oge, %33, %34 : vector<6x4x5xf32>
    %cst_27 = arith.constant 2.000000e+00 : f32
    %36 = vector.broadcast %cst_27 : f32 to vector<6x4x5xf32>
    %37 = arith.mulf %32, %36 : vector<6x4x5xf32>
    %cst_28 = arith.constant 0.000000e+00 : f32
    %38 = vector.broadcast %cst_28 : f32 to vector<6x4x5xf32>
    %39 = arith.select %35, %37, %38 : vector<6x4x5xi1>, vector<6x4x5xf32>
    "tpu.trace_start"() <{level = 10 : i32, message = "nqk,nkf->nqf"}> : () -> ()
    %cst_29 = arith.constant dense<0.000000e+00> : vector<6x4x6xf32>
    %40 = tpu.matmul %39, %20, %cst_29 {dimension_numbers = #tpu.dot_dimension_numbers<[2], [1], [1], [2], [0, 0, 0, 1, 1, 2], [0], [0]>} : vector<6x4x5xf32>, vector<6x5x6xf32>, vector<6x4x6xf32> -> vector<6x4x6xf32>
    "tpu.trace_stop"() : () -> ()
    %41 = vector.shape_cast %40 : vector<6x4x6xf32> to vector<24x6xf32>
    %c0_30 = arith.constant 0 : index
    %c0_31 = arith.constant 0 : index
    %42 = vector.load %arg10[%c0_30, %c0_31] : memref<6x10xf32, #tpu.memory_space<vmem>>, vector<6x10xf32>
    %cst_32 = arith.constant dense<0.000000e+00> : vector<24x10xf32>
    %43 = tpu.matmul %41, %42, %cst_32 {dimension_numbers = #tpu.dot_dimension_numbers<[1], [0], [0], [1], [0, 0, 1, 1], [], []>} : vector<24x6xf32>, vector<6x10xf32>, vector<24x10xf32> -> vector<24x10xf32>
    %c0_33 = arith.constant 0 : index
    %c0_34 = arith.constant 0 : index
    %44 = vector.load %arg11[%c0_33, %c0_34] : memref<1x10xf32, #tpu.memory_space<vmem>>, vector<1x10xf32>
    %45 = vector.broadcast %44 : vector<1x10xf32> to vector<24x10xf32>
    %46 = arith.addf %43, %45 : vector<24x10xf32>
    %c0_35 = arith.constant 0 : index
    %c0_36 = arith.constant 0 : index
    %47 = vector.load %arg12[%c0_35, %c0_36] : memref<24x10xf32, #tpu.memory_space<vmem>>, vector<24x10xf32>
    tpu.vector_store %arg12[%c0_35, %c0_36], %46 {strides = array<i32>} : memref<24x10xf32, #tpu.memory_space<vmem>>, vector<24x10xf32>,
    return
  }
}

</mosaic_0001>

<llo_original>
// kernel: tpu_custom_call.1
$region0: #{tpu_custom_call.1}
  #allocation0 [shape = 'u32[]', space=smem, size = 0x4, offset = 0x4, fixed_abs, tag = 'smem constant byte address 0x4 - core index']
  #allocation1 [shape = 'u32[144,128]{1,0:T(1,128)}', space=vmem, size = 0x12000, scoped, tag = 'internal scratch']
  %s0 = inlined_call_operand.vmem [shape: f32[24,10], index: 0, kind: input, shape index: {}]
  %s1 = inlined_call_operand.vmem [shape: f32[30,10], index: 1, kind: input, shape index: {}]
  %s2 = inlined_call_operand.vmem [shape: f32[30,10], index: 2, kind: input, shape index: {}]
  %s3 = inlined_call_operand.vmem [shape: f32[6,4,5], index: 3, kind: input, shape index: {}]
  %s4 = inlined_call_operand.vmem [shape: f32[10,5], index: 4, kind: input, shape index: {}]
  %s5 = inlined_call_operand.vmem [shape: f32[1,5], index: 5, kind: input, shape index: {}]
  %s6 = inlined_call_operand.vmem [shape: f32[10,5], index: 6, kind: input, shape index: {}]
  %s7 = inlined_call_operand.vmem [shape: f32[1,5], index: 7, kind: input, shape index: {}]
  %s8 = inlined_call_operand.vmem [shape: f32[10,6], index: 8, kind: input, shape index: {}]
  %s9 = inlined_call_operand.vmem [shape: f32[1,6], index: 9, kind: input, shape index: {}]
  %s10 = inlined_call_operand.vmem [shape: f32[6,10], index: 10, kind: input, shape index: {}]
  %s11 = inlined_call_operand.vmem [shape: f32[1,10], index: 11, kind: input, shape index: {}]
  %s12 = inlined_call_operand.vmem [shape: f32[24,10], index: 12, kind: output, shape index: {}]
  %s13 = sld [smem:[#allocation0]]
  $region58: #{tpu_custom_call.1} parent=0
    _
  %s15 = ssub.s32 1, %s13
  %s16 = scalar_select 0, %s15, %s13
  // Predicated region
  $region2: #{tpu_custom_call.1} parent=0 // pred_check
    _
  $region3: #{tpu_custom_call.1} parent=0 // pred_check_branch
    %18 = sbr.rel (0) target = $region5
  $region4: #{tpu_custom_call.1} parent=0 // pred_region
    _
  $region5: #{tpu_custom_call.1} parent=0 // pred_fallthru
    _
  // Predicated region
  $region6: #{tpu_custom_call.1} parent=0 // pred_check
    _
  $region7: #{tpu_custom_call.1} parent=0 // pred_check_branch
    %20 = sbr.rel (0) target = $region9
  $region8: #{tpu_custom_call.1} parent=0 // pred_region
    _
  $region9: #{tpu_custom_call.1} parent=0 // pred_fallthru
    _
  // Predicated region
  $region10: #{tpu_custom_call.1} parent=0 // pred_check
    _
  $region11: #{tpu_custom_call.1} parent=0 // pred_check_branch
    %22 = sbr.rel (0) target = $region13
  $region12: #{tpu_custom_call.1} parent=0 // pred_region
    _
  $region13: #{tpu_custom_call.1} parent=0 // pred_fallthru
    _
  // Predicated region
  $region14: #{tpu_custom_call.1} parent=0 // pred_check
    _
  $region15: #{tpu_custom_call.1} parent=0 // pred_check_branch
    %24 = sbr.rel (0) target = $region17
  $region16: #{tpu_custom_call.1} parent=0 // pred_region
    _
  $region17: #{tpu_custom_call.1} parent=0 // pred_fallthru
    _
  // Predicated region
  $region18: #{tpu_custom_call.1} parent=0 // pred_check
    _
  $region19: #{tpu_custom_call.1} parent=0 // pred_check_branch
    %26 = sbr.rel (0) target = $region21
  $region20: #{tpu_custom_call.1} parent=0 // pred_region
    _
  $region21: #{tpu_custom_call.1} parent=0 // pred_fallthru
    _
  // Predicated region
  $region22: #{tpu_custom_call.1} parent=0 // pred_check
    _
  $region23: #{tpu_custom_call.1} parent=0 // pred_check_branch
    %28 = sbr.rel (0) target = $region25
  $region24: #{tpu_custom_call.1} parent=0 // pred_region
    _
  $region25: #{tpu_custom_call.1} parent=0 // pred_fallthru
    _
  // Predicated region
  $region26: #{tpu_custom_call.1} parent=0 // pred_check
    _
  $region27: #{tpu_custom_call.1} parent=0 // pred_check_branch
    %30 = sbr.rel (0) target = $region29
  $region28: #{tpu_custom_call.1} parent=0 // pred_region
    _
  $region29: #{tpu_custom_call.1} parent=0 // pred_fallthru
    _
  // Predicated region
  $region30: #{tpu_custom_call.1} parent=0 // pred_check
    _
  $region31: #{tpu_custom_call.1} parent=0 // pred_check_branch
    %32 = sbr.rel (0) target = $region33
  $region32: #{tpu_custom_call.1} parent=0 // pred_region
    _
  $region33: #{tpu_custom_call.1} parent=0 // pred_fallthru
    _
  // Predicated region
  $region34: #{tpu_custom_call.1} parent=0 // pred_check
    _
  $region35: #{tpu_custom_call.1} parent=0 // pred_check_branch
    %34 = sbr.rel (0) target = $region37
  $region36: #{tpu_custom_call.1} parent=0 // pred_region
    _
  $region37: #{tpu_custom_call.1} parent=0 // pred_fallthru
    _
  // Predicated region
  $region38: #{tpu_custom_call.1} parent=0 // pred_check
    _
  $region39: #{tpu_custom_call.1} parent=0 // pred_check_branch
    %36 = sbr.rel (0) target = $region41
  $region40: #{tpu_custom_call.1} parent=0 // pred_region
    _
  $region41: #{tpu_custom_call.1} parent=0 // pred_fallthru
    _
  // Predicated region
  $region42: #{tpu_custom_call.1} parent=0 // pred_check
    _
  $region43: #{tpu_custom_call.1} parent=0 // pred_check_branch
    %38 = sbr.rel (0) target = $region45
  $region44: #{tpu_custom_call.1} parent=0 // pred_region
    _
  $region45: #{tpu_custom_call.1} parent=0 // pred_fallthru
    _
  // Predicated region
  $region46: #{tpu_custom_call.1} parent=0 // pred_check
    _
  $region47: #{tpu_custom_call.1} parent=0 // pred_check_branch
    %40 = sbr.rel (0) target = $region49
  $region48: #{tpu_custom_call.1} parent=0 // pred_region
    _
  $region49: #{tpu_custom_call.1} parent=0 // pred_fallthru
    _
  %v41 = vld [vmem:[%s0] sm:$0xff]
  %v42 = vld [vmem:[%s0 + $0x8] sm:$0xff]
  %v43 = vld [vmem:[%s0 + $0x10] sm:$0xff]
  %v44 = vld [vmem:[%s4] sm:$0xff]
  %v45 = vld [vmem:[%s4 + $0x8] sm:$0x3]
  %v46 = vld [vmem:[%s5] sm:$0x1]
  %v48 = vlaneseq
  %v49 = vshrl.u32 %v48, 7
  %v50 = vsub.s32 0, %v49
  %v51 = vrot.slane %v46, %v50
  %vm53 = vcmask 80896
  %v55 = vsel %vm53, %v41, 0
  %v58 = vsel %vm53, %v42, 0
  %v61 = vsel %vm53, %v43, 0
  %vm63 = vcmask 1041408
  %v65 = vsel %vm63, %v45, 0
  %67 = vmatprep.subr.mxu0 0.0
  %68 = vmatpush1.msra.mxu0 0.0
  %69 = vmatprep.subr.mxu0 0.0
  %70 = vmatpush1.msra.mxu0 0.0
  %71 = vmatprep.subr.mxu0 0.0
  %72 = vmatpush1.msra.mxu0 0.0
  %73 = vmatprep.subr.mxu0 0.0
  %74 = vmatpush1.msra.mxu0 0.0
  %75 = vmatprep.subr.mxu0 0.0
  %76 = vmatpush1.msra.mxu0 0.0
  %77 = vmatprep.subr.mxu0 0.0
  %78 = vmatpush1.msra.mxu0 0.0
  %79 = vmatprep.subr.mxu0 0.0
  %80 = vmatpush1.msra.mxu0 0.0
  %81 = vmatprep.subr.mxu0 0.0
  %82 = vmatpush1.msra.mxu0 0.0
  %83 = vmatprep.subr.mxu0 0.0
  %84 = vmatpush1.msra.mxu0 0.0
  %85 = vmatprep.subr.mxu0 0.0
  %86 = vmatpush1.msra.mxu0 0.0
  %87 = vmatprep.subr.mxu0 0.0
  %88 = vmatpush1.msra.mxu0 0.0
  %89 = vmatprep.subr.mxu0 0.0
  %90 = vmatpush1.msra.mxu0 0.0
  %91 = vmatprep.subr.mxu0 0.0
  %92 = vmatpush1.msra.mxu0 0.0
  %93 = vmatprep.subr.mxu0 0.0
  %94 = vmatpush1.msra.mxu0 0.0
  %95 = vmatprep.subr.mxu0 0.0
  %96 = vmatpush1.msra.mxu0 %v65
  %97 = vmatprep.subr.mxu0 0.0
  %98 = vmatpush1.msra.mxu0 %v44
  %99 = vmatprep.subr.mxu0 0.0
  %100 = vmatpush2.msra.mxu0 0.0
  %101 = vmatprep.subr.mxu0 0.0
  %102 = vmatpush2.msra.mxu0 0.0
  %103 = vmatprep.subr.mxu0 0.0
  %104 = vmatpush2.msra.mxu0 0.0
  %105 = vmatprep.subr.mxu0 0.0
  %106 = vmatpush2.msra.mxu0 0.0
  %107 = vmatprep.subr.mxu0 0.0
  %108 = vmatpush2.msra.mxu0 0.0
  %109 = vmatprep.subr.mxu0 0.0
  %110 = vmatpush2.msra.mxu0 0.0
  %111 = vmatprep.subr.mxu0 0.0
  %112 = vmatpush2.msra.mxu0 0.0
  %113 = vmatprep.subr.mxu0 0.0
  %114 = vmatpush2.msra.mxu0 0.0
  %115 = vmatprep.subr.mxu0 0.0
  %116 = vmatpush2.msra.mxu0 0.0
  %117 = vmatprep.subr.mxu0 0.0
  %118 = vmatpush2.msra.mxu0 0.0
  %119 = vmatprep.subr.mxu0 0.0
  %120 = vmatpush2.msra.mxu0 0.0
  %121 = vmatprep.subr.mxu0 0.0
  %122 = vmatpush2.msra.mxu0 0.0
  %123 = vmatprep.subr.mxu0 0.0
  %124 = vmatpush2.msra.mxu0 0.0
  %125 = vmatprep.subr.mxu0 0.0
  %126 = vmatpush2.msra.mxu0 0.0
  %127 = vmatprep.subr.mxu0 0.0
  %128 = vmatpush2.msra.mxu0 0.0
  %129 = vmatprep.subr.mxu0 0.0
  %130 = vmatpush2.msra.mxu0 0.0
  %131 = vmatprep.mubr.f32.mxu0 0.0
  %132 = vmatmul.mubr.f32.gmra.mxu0 %v55
  %v133 = vpop.f32.mrf.mxu0
  %v134 = vadd.f32 %v51, %v133
  %v135 = vpop.f32.mrf.mxu0
  %136 = vmatprep.mubr.f32.mxu0 0.0
  %137 = vmatmul.mubr.f32.gmra.mxu0 %v58
  %v138 = vpop.f32.mrf.mxu0
  %v139 = vadd.f32 %v51, %v138
  %v140 = vpop.f32.mrf.mxu0
  %141 = vmatprep.mubr.f32.mxu0 0.0
  %142 = vmatmul.mubr.f32.gmra.mxu0 %v61
  %v143 = vpop.f32.mrf.mxu0
  %v144 = vadd.f32 %v51, %v143
  %v145 = vpop.f32.mrf.mxu0
  %146 = vdwg.mxu0
  %v147 = vld [vmem:[%s1] sm:$0xff]
  %v148 = vld [vmem:[%s1 + $0x8] sm:$0xff]
  %v149 = vld [vmem:[%s1 + $0x10] sm:$0xff]
  %v150 = vld [vmem:[%s1 + $0x18] sm:$0x3f]
  %v151 = vld [vmem:[%s6] sm:$0xff]
  %v152 = vld [vmem:[%s6 + $0x8] sm:$0x3]
  %v153 = vld [vmem:[%s7] sm:$0x1]
  %v155 = vlaneseq
  %v156 = vshrl.u32 %v155, 7
  %v157 = vsub.s32 0, %v156
  %v158 = vrot.slane %v153, %v157
  %v161 = vsel %vm53, %v147, 0
  %v164 = vsel %vm53, %v148, 0
  %v167 = vsel %vm53, %v149, 0
  %v170 = vsel %vm53, %v150, 0
  %v173 = vsel %vm63, %v152, 0
  %175 = vmatprep.subr.mxu0 0.0
  %176 = vmatpush1.msra.mxu0 0.0
  %177 = vmatprep.subr.mxu0 0.0
  %178 = vmatpush1.msra.mxu0 0.0
  %179 = vmatprep.subr.mxu0 0.0
  %180 = vmatpush1.msra.mxu0 0.0
  %181 = vmatprep.subr.mxu0 0.0
  %182 = vmatpush1.msra.mxu0 0.0
  %183 = vmatprep.subr.mxu0 0.0
  %184 = vmatpush1.msra.mxu0 0.0
  %185 = vmatprep.subr.mxu0 0.0
  %186 = vmatpush1.msra.mxu0 0.0
  %187 = vmatprep.subr.mxu0 0.0
  %188 = vmatpush1.msra.mxu0 0.0
  %189 = vmatprep.subr.mxu0 0.0
  %190 = vmatpush1.msra.mxu0 0.0
  %191 = vmatprep.subr.mxu0 0.0
  %192 = vmatpush1.msra.mxu0 0.0
  %193 = vmatprep.subr.mxu0 0.0
  %194 = vmatpush1.msra.mxu0 0.0
  %195 = vmatprep.subr.mxu0 0.0
  %196 = vmatpush1.msra.mxu0 0.0
  %197 = vmatprep.subr.mxu0 0.0
  %198 = vmatpush1.msra.mxu0 0.0
  %199 = vmatprep.subr.mxu0 0.0
  %200 = vmatpush1.msra.mxu0 0.0
  %201 = vmatprep.subr.mxu0 0.0
  %202 = vmatpush1.msra.mxu0 0.0
  %203 = vmatprep.subr.mxu0 0.0
  %204 = vmatpush1.msra.mxu0 %v173
  %205 = vmatprep.subr.mxu0 0.0
  %206 = vmatpush1.msra.mxu0 %v151
  %207 = vmatprep.subr.mxu0 0.0
  %208 = vmatpush2.msra.mxu0 0.0
  %209 = vmatprep.subr.mxu0 0.0
  %210 = vmatpush2.msra.mxu0 0.0
  %211 = vmatprep.subr.mxu0 0.0
  %212 = vmatpush2.msra.mxu0 0.0
  %213 = vmatprep.subr.mxu0 0.0
  %214 = vmatpush2.msra.mxu0 0.0
  %215 = vmatprep.subr.mxu0 0.0
  %216 = vmatpush2.msra.mxu0 0.0
  %217 = vmatprep.subr.mxu0 0.0
  %218 = vmatpush2.msra.mxu0 0.0
  %219 = vmatprep.subr.mxu0 0.0
  %220 = vmatpush2.msra.mxu0 0.0
  %221 = vmatprep.subr.mxu0 0.0
  %222 = vmatpush2.msra.mxu0 0.0
  %223 = vmatprep.subr.mxu0 0.0
  %224 = vmatpush2.msra.mxu0 0.0
  %225 = vmatprep.subr.mxu0 0.0
  %226 = vmatpush2.msra.mxu0 0.0
  %227 = vmatprep.subr.mxu0 0.0
  %228 = vmatpush2.msra.mxu0 0.0
  %229 = vmatprep.subr.mxu0 0.0
  %230 = vmatpush2.msra.mxu0 0.0
  %231 = vmatprep.subr.mxu0 0.0
  %232 = vmatpush2.msra.mxu0 0.0
  %233 = vmatprep.subr.mxu0 0.0
  %234 = vmatpush2.msra.mxu0 0.0
  %235 = vmatprep.subr.mxu0 0.0
  %236 = vmatpush2.msra.mxu0 0.0
  %237 = vmatprep.subr.mxu0 0.0
  %238 = vmatpush2.msra.mxu0 0.0
  %239 = vmatprep.mubr.f32.mxu0 0.0
  %240 = vmatmul.mubr.f32.gmra.mxu0 %v161
  %v241 = vpop.f32.mrf.mxu0
  %v242 = vadd.f32 %v158, %v241
  %v243 = vpop.f32.mrf.mxu0
  %244 = vmatprep.mubr.f32.mxu0 0.0
  %245 = vmatmul.mubr.f32.gmra.mxu0 %v164
  %v246 = vpop.f32.mrf.mxu0
  %v247 = vadd.f32 %v158, %v246
  %v248 = vpop.f32.mrf.mxu0
  %249 = vmatprep.mubr.f32.mxu0 0.0
  %250 = vmatmul.mubr.f32.gmra.mxu0 %v167
  %v251 = vpop.f32.mrf.mxu0
  %v252 = vadd.f32 %v158, %v251
  %v253 = vpop.f32.mrf.mxu0
  %254 = vmatprep.mubr.f32.mxu0 0.0
  %255 = vmatmul.mubr.f32.gmra.mxu0 %v170
  %v256 = vpop.f32.mrf.mxu0
  %v257 = vadd.f32 %v158, %v256
  %v258 = vpop.f32.mrf.mxu0
  %259 = vdwg.mxu0
  %v260 = vld [vmem:[%s2] sm:$0xff]
  %v261 = vld [vmem:[%s2 + $0x8] sm:$0xff]
  %v262 = vld [vmem:[%s2 + $0x10] sm:$0xff]
  %v263 = vld [vmem:[%s2 + $0x18] sm:$0x3f]
  %v264 = vld [vmem:[%s8] sm:$0xff]
  %v265 = vld [vmem:[%s8 + $0x8] sm:$0x3]
  %v266 = vld [vmem:[%s9] sm:$0x1]
  %v268 = vlaneseq
  %v269 = vshrl.u32 %v268, 7
  %v270 = vsub.s32 0, %v269
  %v271 = vrot.slane %v266, %v270
  %v274 = vsel %vm53, %v260, 0
  %v277 = vsel %vm53, %v261, 0
  %v280 = vsel %vm53, %v262, 0
  %v283 = vsel %vm53, %v263, 0
  %v286 = vsel %vm63, %v265, 0
  %288 = vmatprep.subr.mxu0 0.0
  %289 = vmatpush1.msra.mxu0 0.0
  %290 = vmatprep.subr.mxu0 0.0
  %291 = vmatpush1.msra.mxu0 0.0
  %292 = vmatprep.subr.mxu0 0.0
  %293 = vmatpush1.msra.mxu0 0.0
  %294 = vmatprep.subr.mxu0 0.0
  %295 = vmatpush1.msra.mxu0 0.0
  %296 = vmatprep.subr.mxu0 0.0
  %297 = vmatpush1.msra.mxu0 0.0
  %298 = vmatprep.subr.mxu0 0.0
  %299 = vmatpush1.msra.mxu0 0.0
  %300 = vmatprep.subr.mxu0 0.0
  %301 = vmatpush1.msra.mxu0 0.0
  %302 = vmatprep.subr.mxu0 0.0
  %303 = vmatpush1.msra.mxu0 0.0
  %304 = vmatprep.subr.mxu0 0.0
  %305 = vmatpush1.msra.mxu0 0.0
  %306 = vmatprep.subr.mxu0 0.0
  %307 = vmatpush1.msra.mxu0 0.0
  %308 = vmatprep.subr.mxu0 0.0
  %309 = vmatpush1.msra.mxu0 0.0
  %310 = vmatprep.subr.mxu0 0.0
  %311 = vmatpush1.msra.mxu0 0.0
  %312 = vmatprep.subr.mxu0 0.0
  %313 = vmatpush1.msra.mxu0 0.0
  %314 = vmatprep.subr.mxu0 0.0
  %315 = vmatpush1.msra.mxu0 0.0
  %316 = vmatprep.subr.mxu0 0.0
  %317 = vmatpush1.msra.mxu0 %v286
  %318 = vmatprep.subr.mxu0 0.0
  %319 = vmatpush1.msra.mxu0 %v264
  %320 = vmatprep.subr.mxu0 0.0
  %321 = vmatpush2.msra.mxu0 0.0
  %322 = vmatprep.subr.mxu0 0.0
  %323 = vmatpush2.msra.mxu0 0.0
  %324 = vmatprep.subr.mxu0 0.0
  %325 = vmatpush2.msra.mxu0 0.0
  %326 = vmatprep.subr.mxu0 0.0
  %327 = vmatpush2.msra.mxu0 0.0
  %328 = vmatprep.subr.mxu0 0.0
  %329 = vmatpush2.msra.mxu0 0.0
  %330 = vmatprep.subr.mxu0 0.0
  %331 = vmatpush2.msra.mxu0 0.0
  %332 = vmatprep.subr.mxu0 0.0
  %333 = vmatpush2.msra.mxu0 0.0
  %334 = vmatprep.subr.mxu0 0.0
  %335 = vmatpush2.msra.mxu0 0.0
  %336 = vmatprep.subr.mxu0 0.0
  %337 = vmatpush2.msra.mxu0 0.0
  %338 = vmatprep.subr.mxu0 0.0
  %339 = vmatpush2.msra.mxu0 0.0
  %340 = vmatprep.subr.mxu0 0.0
  %341 = vmatpush2.msra.mxu0 0.0
  %342 = vmatprep.subr.mxu0 0.0
  %343 = vmatpush2.msra.mxu0 0.0
  %344 = vmatprep.subr.mxu0 0.0
  %345 = vmatpush2.msra.mxu0 0.0
  %346 = vmatprep.subr.mxu0 0.0
  %347 = vmatpush2.msra.mxu0 0.0
  %348 = vmatprep.subr.mxu0 0.0
  %349 = vmatpush2.msra.mxu0 0.0
  %350 = vmatprep.subr.mxu0 0.0
  %351 = vmatpush2.msra.mxu0 0.0
  %352 = vmatprep.mubr.f32.mxu0 0.0
  %353 = vmatmul.mubr.f32.gmra.mxu0 %v274
  %v354 = vpop.f32.mrf.mxu0
  %v355 = vadd.f32 %v271, %v354
  %v356 = vpop.f32.mrf.mxu0
  %357 = vmatprep.mubr.f32.mxu0 0.0
  %358 = vmatmul.mubr.f32.gmra.mxu0 %v277
  %v359 = vpop.f32.mrf.mxu0
  %v360 = vadd.f32 %v271, %v359
  %v361 = vpop.f32.mrf.mxu0
  %362 = vmatprep.mubr.f32.mxu0 0.0
  %363 = vmatmul.mubr.f32.gmra.mxu0 %v280
  %v364 = vpop.f32.mrf.mxu0
  %v365 = vadd.f32 %v271, %v364
  %v366 = vpop.f32.mrf.mxu0
  %367 = vmatprep.mubr.f32.mxu0 0.0
  %368 = vmatmul.mubr.f32.gmra.mxu0 %v283
  %v369 = vpop.f32.mrf.mxu0
  %v370 = vadd.f32 %v271, %v369
  %v371 = vpop.f32.mrf.mxu0
  %372 = vdwg.mxu0
  %v376 = vcombine.high %v134, %v134
  %v377 = vcombine.high %v139, %v139
  %v378 = vcombine.high %v144, %v144
  %v383 = vcombine.high %v242, %v242
  %v385 = vunpack.c.l.s4 1966171168
  %v386 = vunpack.c.0.s8 %v385
  %v387 = vlaneseq
  %v388 = vshrl.u32 %v387, 7
  %v389 = vsub.s32 %v386, %v388
  %v390 = vrot.slane %v242, %v389
  %v392 = vunpack.c.l.s4 1966171168
  %v393 = vunpack.c.0.s8 %v392
  %v394 = vlaneseq
  %v395 = vshrl.u32 %v394, 7
  %v396 = vsub.s32 %v393, %v395
  %v397 = vrot.slane %v383, %v396
  %v398 = vcombine.high %v390, %v390
  %v399 = vcombine.high %v397, %v397
  %v401 = vunpack.c.l.s4 1966171168
  %v402 = vunpack.c.0.s8 %v401
  %v403 = vlaneseq
  %v404 = vshrl.u32 %v403, 7
  %v405 = vsub.s32 %v402, %v404
  %v406 = vrot.slane %v390, %v405
  %v408 = vunpack.c.l.s4 1966171168
  %v409 = vunpack.c.0.s8 %v408
  %v410 = vlaneseq
  %v411 = vshrl.u32 %v410, 7
  %v412 = vsub.s32 %v409, %v411
  %v413 = vrot.slane %v397, %v412
  %v415 = vunpack.c.l.s4 1966171168
  %v416 = vunpack.c.0.s8 %v415
  %v417 = vlaneseq
  %v418 = vshrl.u32 %v417, 7
  %v419 = vsub.s32 %v416, %v418
  %v420 = vrot.slane %v398, %v419
  %v422 = vunpack.c.l.s4 1966171168
  %v423 = vunpack.c.0.s8 %v422
  %v424 = vlaneseq
  %v425 = vshrl.u32 %v424, 7
  %v426 = vsub.s32 %v423, %v425
  %v427 = vrot.slane %v399, %v426
  %v428 = vcombine.high %v406, %v406
  %v429 = vcombine.high %v413, %v413
  %v430 = vcombine.high %v420, %v420
  %v431 = vcombine.high %v427, %v427
  %v432 = vcombine.high %v247, %v247
  %v434 = vunpack.c.l.s4 1966171168
  %v435 = vunpack.c.0.s8 %v434
  %v436 = vlaneseq
  %v437 = vshrl.u32 %v436, 7
  %v438 = vsub.s32 %v435, %v437
  %v439 = vrot.slane %v247, %v438
  %v441 = vunpack.c.l.s4 1966171168
  %v442 = vunpack.c.0.s8 %v441
  %v443 = vlaneseq
  %v444 = vshrl.u32 %v443, 7
  %v445 = vsub.s32 %v442, %v444
  %v446 = vrot.slane %v432, %v445
  %v447 = vcombine.high %v439, %v439
  %v448 = vcombine.high %v446, %v446
  %v450 = vunpack.c.l.s4 1966171168
  %v451 = vunpack.c.0.s8 %v450
  %v452 = vlaneseq
  %v453 = vshrl.u32 %v452, 7
  %v454 = vsub.s32 %v451, %v453
  %v455 = vrot.slane %v439, %v454
  %v457 = vunpack.c.l.s4 1966171168
  %v458 = vunpack.c.0.s8 %v457
  %v459 = vlaneseq
  %v460 = vshrl.u32 %v459, 7
  %v461 = vsub.s32 %v458, %v460
  %v462 = vrot.slane %v446, %v461
  %v464 = vunpack.c.l.s4 1966171168
  %v465 = vunpack.c.0.s8 %v464
  %v466 = vlaneseq
  %v467 = vshrl.u32 %v466, 7
  %v468 = vsub.s32 %v465, %v467
  %v469 = vrot.slane %v447, %v468
  %v471 = vunpack.c.l.s4 1966171168
  %v472 = vunpack.c.0.s8 %v471
  %v473 = vlaneseq
  %v474 = vshrl.u32 %v473, 7
  %v475 = vsub.s32 %v472, %v474
  %v476 = vrot.slane %v448, %v475
  %v477 = vcombine.high %v455, %v455
  %v478 = vcombine.high %v462, %v462
  %v479 = vcombine.high %v469, %v469
  %v480 = vcombine.high %v476, %v476
  %v481 = vcombine.high %v252, %v252
  %v483 = vunpack.c.l.s4 1966171168
  %v484 = vunpack.c.0.s8 %v483
  %v485 = vlaneseq
  %v486 = vshrl.u32 %v485, 7
  %v487 = vsub.s32 %v484, %v486
  %v488 = vrot.slane %v252, %v487
  %v490 = vunpack.c.l.s4 1966171168
  %v491 = vunpack.c.0.s8 %v490
  %v492 = vlaneseq
  %v493 = vshrl.u32 %v492, 7
  %v494 = vsub.s32 %v491, %v493
  %v495 = vrot.slane %v481, %v494
  %v496 = vcombine.high %v488, %v488
  %v497 = vcombine.high %v495, %v495
  %v499 = vunpack.c.l.s4 1966171168
  %v500 = vunpack.c.0.s8 %v499
  %v501 = vlaneseq
  %v502 = vshrl.u32 %v501, 7
  %v503 = vsub.s32 %v500, %v502
  %v504 = vrot.slane %v488, %v503
  %v506 = vunpack.c.l.s4 1966171168
  %v507 = vunpack.c.0.s8 %v506
  %v508 = vlaneseq
  %v509 = vshrl.u32 %v508, 7
  %v510 = vsub.s32 %v507, %v509
  %v511 = vrot.slane %v495, %v510
  %v513 = vunpack.c.l.s4 1966171168
  %v514 = vunpack.c.0.s8 %v513
  %v515 = vlaneseq
  %v516 = vshrl.u32 %v515, 7
  %v517 = vsub.s32 %v514, %v516
  %v518 = vrot.slane %v496, %v517
  %v520 = vunpack.c.l.s4 1966171168
  %v521 = vunpack.c.0.s8 %v520
  %v522 = vlaneseq
  %v523 = vshrl.u32 %v522, 7
  %v524 = vsub.s32 %v521, %v523
  %v525 = vrot.slane %v497, %v524
  %v526 = vcombine.high %v504, %v504
  %v527 = vcombine.high %v511, %v511
  %v528 = vcombine.high %v518, %v518
  %v529 = vcombine.high %v525, %v525
  %v530 = vcombine.high %v257, %v257
  %v532 = vunpack.c.l.s4 1966171168
  %v533 = vunpack.c.0.s8 %v532
  %v534 = vlaneseq
  %v535 = vshrl.u32 %v534, 7
  %v536 = vsub.s32 %v533, %v535
  %v537 = vrot.slane %v257, %v536
  %v539 = vunpack.c.l.s4 1966171168
  %v540 = vunpack.c.0.s8 %v539
  %v541 = vlaneseq
  %v542 = vshrl.u32 %v541, 7
  %v543 = vsub.s32 %v540, %v542
  %v544 = vrot.slane %v530, %v543
  %v545 = vcombine.high %v537, %v537
  %v546 = vcombine.high %v544, %v544
  %v548 = vunpack.c.l.s4 1966171168
  %v549 = vunpack.c.0.s8 %v548
  %v550 = vlaneseq
  %v551 = vshrl.u32 %v550, 7
  %v552 = vsub.s32 %v549, %v551
  %v553 = vrot.slane %v537, %v552
  %v555 = vunpack.c.l.s4 1966171168
  %v556 = vunpack.c.0.s8 %v555
  %v557 = vlaneseq
  %v558 = vshrl.u32 %v557, 7
  %v559 = vsub.s32 %v556, %v558
  %v560 = vrot.slane %v544, %v559
  %v562 = vunpack.c.l.s4 1966171168
  %v563 = vunpack.c.0.s8 %v562
  %v564 = vlaneseq
  %v565 = vshrl.u32 %v564, 7
  %v566 = vsub.s32 %v563, %v565
  %v567 = vrot.slane %v545, %v566
  %v569 = vunpack.c.l.s4 1966171168
  %v570 = vunpack.c.0.s8 %v569
  %v571 = vlaneseq
  %v572 = vshrl.u32 %v571, 7
  %v573 = vsub.s32 %v570, %v572
  %v574 = vrot.slane %v546, %v573
  %v575 = vcombine.high %v553, %v553
  %v576 = vcombine.high %v567, %v567
  %v581 = vcombine.high %v355, %v355
  %v583 = vunpack.c.l.s4 1966171168
  %v584 = vunpack.c.0.s8 %v583
  %v585 = vlaneseq
  %v586 = vshrl.u32 %v585, 7
  %v587 = vsub.s32 %v584, %v586
  %v588 = vrot.slane %v355, %v587
  %v590 = vunpack.c.l.s4 1966171168
  %v591 = vunpack.c.0.s8 %v590
  %v592 = vlaneseq
  %v593 = vshrl.u32 %v592, 7
  %v594 = vsub.s32 %v591, %v593
  %v595 = vrot.slane %v581, %v594
  %v596 = vcombine.high %v588, %v588
  %v597 = vcombine.high %v595, %v595
  %v599 = vunpack.c.l.s4 1966171168
  %v600 = vunpack.c.0.s8 %v599
  %v601 = vlaneseq
  %v602 = vshrl.u32 %v601, 7
  %v603 = vsub.s32 %v600, %v602
  %v604 = vrot.slane %v588, %v603
  %v606 = vunpack.c.l.s4 1966171168
  %v607 = vunpack.c.0.s8 %v606
  %v608 = vlaneseq
  %v609 = vshrl.u32 %v608, 7
  %v610 = vsub.s32 %v607, %v609
  %v611 = vrot.slane %v595, %v610
  %v613 = vunpack.c.l.s4 1966171168
  %v614 = vunpack.c.0.s8 %v613
  %v615 = vlaneseq
  %v616 = vshrl.u32 %v615, 7
  %v617 = vsub.s32 %v614, %v616
  %v618 = vrot.slane %v596, %v617
  %v620 = vunpack.c.l.s4 1966171168
  %v621 = vunpack.c.0.s8 %v620
  %v622 = vlaneseq
  %v623 = vshrl.u32 %v622, 7
  %v624 = vsub.s32 %v621, %v623
  %v625 = vrot.slane %v597, %v624
  %v626 = vcombine.high %v604, %v604
  %v627 = vcombine.high %v611, %v611
  %v628 = vcombine.high %v618, %v618
  %v629 = vcombine.high %v625, %v625
  %v630 = vcombine.high %v360, %v360
  %v632 = vunpack.c.l.s4 1966171168
  %v633 = vunpack.c.0.s8 %v632
  %v634 = vlaneseq
  %v635 = vshrl.u32 %v634, 7
  %v636 = vsub.s32 %v633, %v635
  %v637 = vrot.slane %v360, %v636
  %v639 = vunpack.c.l.s4 1966171168
  %v640 = vunpack.c.0.s8 %v639
  %v641 = vlaneseq
  %v642 = vshrl.u32 %v641, 7
  %v643 = vsub.s32 %v640, %v642
  %v644 = vrot.slane %v630, %v643
  %v645 = vcombine.high %v637, %v637
  %v646 = vcombine.high %v644, %v644
  %v648 = vunpack.c.l.s4 1966171168
  %v649 = vunpack.c.0.s8 %v648
  %v650 = vlaneseq
  %v651 = vshrl.u32 %v650, 7
  %v652 = vsub.s32 %v649, %v651
  %v653 = vrot.slane %v637, %v652
  %v655 = vunpack.c.l.s4 1966171168
  %v656 = vunpack.c.0.s8 %v655
  %v657 = vlaneseq
  %v658 = vshrl.u32 %v657, 7
  %v659 = vsub.s32 %v656, %v658
  %v660 = vrot.slane %v644, %v659
  %v662 = vunpack.c.l.s4 1966171168
  %v663 = vunpack.c.0.s8 %v662
  %v664 = vlaneseq
  %v665 = vshrl.u32 %v664, 7
  %v666 = vsub.s32 %v663, %v665
  %v667 = vrot.slane %v645, %v666
  %v669 = vunpack.c.l.s4 1966171168
  %v670 = vunpack.c.0.s8 %v669
  %v671 = vlaneseq
  %v672 = vshrl.u32 %v671, 7
  %v673 = vsub.s32 %v670, %v672
  %v674 = vrot.slane %v646, %v673
  %v675 = vcombine.high %v653, %v653
  %v676 = vcombine.high %v660, %v660
  %v677 = vcombine.high %v667, %v667
  %v678 = vcombine.high %v674, %v674
  %v679 = vcombine.high %v365, %v365
  %v681 = vunpack.c.l.s4 1966171168
  %v682 = vunpack.c.0.s8 %v681
  %v683 = vlaneseq
  %v684 = vshrl.u32 %v683, 7
  %v685 = vsub.s32 %v682, %v684
  %v686 = vrot.slane %v365, %v685
  %v688 = vunpack.c.l.s4 1966171168
  %v689 = vunpack.c.0.s8 %v688
  %v690 = vlaneseq
  %v691 = vshrl.u32 %v690, 7
  %v692 = vsub.s32 %v689, %v691
  %v693 = vrot.slane %v679, %v692
  %v694 = vcombine.high %v686, %v686
  %v695 = vcombine.high %v693, %v693
  %v697 = vunpack.c.l.s4 1966171168
  %v698 = vunpack.c.0.s8 %v697
  %v699 = vlaneseq
  %v700 = vshrl.u32 %v699, 7
  %v701 = vsub.s32 %v698, %v700
  %v702 = vrot.slane %v686, %v701
  %v704 = vunpack.c.l.s4 1966171168
  %v705 = vunpack.c.0.s8 %v704
  %v706 = vlaneseq
  %v707 = vshrl.u32 %v706, 7
  %v708 = vsub.s32 %v705, %v707
  %v709 = vrot.slane %v693, %v708
  %v711 = vunpack.c.l.s4 1966171168
  %v712 = vunpack.c.0.s8 %v711
  %v713 = vlaneseq
  %v714 = vshrl.u32 %v713, 7
  %v715 = vsub.s32 %v712, %v714
  %v716 = vrot.slane %v694, %v715
  %v718 = vunpack.c.l.s4 1966171168
  %v719 = vunpack.c.0.s8 %v718
  %v720 = vlaneseq
  %v721 = vshrl.u32 %v720, 7
  %v722 = vsub.s32 %v719, %v721
  %v723 = vrot.slane %v695, %v722
  %v724 = vcombine.high %v702, %v702
  %v725 = vcombine.high %v709, %v709
  %v726 = vcombine.high %v716, %v716
  %v727 = vcombine.high %v723, %v723
  %v728 = vcombine.high %v370, %v370
  %v730 = vunpack.c.l.s4 1966171168
  %v731 = vunpack.c.0.s8 %v730
  %v732 = vlaneseq
  %v733 = vshrl.u32 %v732, 7
  %v734 = vsub.s32 %v731, %v733
  %v735 = vrot.slane %v370, %v734
  %v737 = vunpack.c.l.s4 1966171168
  %v738 = vunpack.c.0.s8 %v737
  %v739 = vlaneseq
  %v740 = vshrl.u32 %v739, 7
  %v741 = vsub.s32 %v738, %v740
  %v742 = vrot.slane %v728, %v741
  %v743 = vcombine.high %v735, %v735
  %v744 = vcombine.high %v742, %v742
  %v746 = vunpack.c.l.s4 1966171168
  %v747 = vunpack.c.0.s8 %v746
  %v748 = vlaneseq
  %v749 = vshrl.u32 %v748, 7
  %v750 = vsub.s32 %v747, %v749
  %v751 = vrot.slane %v735, %v750
  %v753 = vunpack.c.l.s4 1966171168
  %v754 = vunpack.c.0.s8 %v753
  %v755 = vlaneseq
  %v756 = vshrl.u32 %v755, 7
  %v757 = vsub.s32 %v754, %v756
  %v758 = vrot.slane %v742, %v757
  %v760 = vunpack.c.l.s4 1966171168
  %v761 = vunpack.c.0.s8 %v760
  %v762 = vlaneseq
  %v763 = vshrl.u32 %v762, 7
  %v764 = vsub.s32 %v761, %v763
  %v765 = vrot.slane %v743, %v764
  %v767 = vunpack.c.l.s4 1966171168
  %v768 = vunpack.c.0.s8 %v767
  %v769 = vlaneseq
  %v770 = vshrl.u32 %v769, 7
  %v771 = vsub.s32 %v768, %v770
  %v772 = vrot.slane %v744, %v771
  %v773 = vcombine.high %v751, %v751
  %v774 = vcombine.high %v765, %v765
  %v775 = vcombine.low %v406, %v420
  %v776 = vcombine.low %v428, %v430
  %v778 = vunpack.c.l.s4 1966171168
  %v779 = vunpack.c.0.s8 %v778
  %v780 = vlaneseq
  %v781 = vshrl.u32 %v780, 7
  %v782 = vsub.s32 %v779, %v781
  %v783 = vrot.slane %v775, %v782
  %v785 = vunpack.c.l.s4 1966171168
  %v786 = vunpack.c.0.s8 %v785
  %v787 = vlaneseq
  %v788 = vshrl.u32 %v787, 7
  %v789 = vsub.s32 %v786, %v788
  %v790 = vrot.slane %v776, %v789
  %v792 = vunpack.c.l.s4 1966171168
  %v793 = vunpack.c.0.s8 %v792
  %v794 = vlaneseq
  %v795 = vshrl.u32 %v794, 7
  %v796 = vsub.s32 %v793, %v795
  %v797 = vrot.slane %v413, %v796
  %v798 = vcombine.low %v783, %v790
  %v800 = vunpack.c.l.s4 1966171168
  %v801 = vunpack.c.0.s8 %v800
  %v802 = vlaneseq
  %v803 = vshrl.u32 %v802, 7
  %v804 = vsub.s32 %v801, %v803
  %v805 = vrot.slane %v798, %v804
  %v807 = vunpack.c.l.s4 1966171168
  %v808 = vunpack.c.0.s8 %v807
  %v809 = vlaneseq
  %v810 = vshrl.u32 %v809, 7
  %v811 = vsub.s32 %v808, %v810
  %v812 = vrot.slane %v797, %v811
  %v813 = vcombine.low %v805, %v812
  %vm814 = vcmask 39936
  %v815 = vsel %vm814, %v134, 0
  %v817 = vsel %vm814, %v813, 0
  %819 = vmatprep.subr.mxu0 0.0
  %820 = vmatpush1.xpose.msra.mxu0 0.0
  %821 = vmatprep.subr.mxu0 0.0
  %822 = vmatpush1.xpose.msra.mxu0 0.0
  %823 = vmatprep.subr.mxu0 0.0
  %824 = vmatpush1.xpose.msra.mxu0 0.0
  %825 = vmatprep.subr.mxu0 0.0
  %826 = vmatpush1.xpose.msra.mxu0 0.0
  %827 = vmatprep.subr.mxu0 0.0
  %828 = vmatpush1.xpose.msra.mxu0 0.0
  %829 = vmatprep.subr.mxu0 0.0
  %830 = vmatpush1.xpose.msra.mxu0 0.0
  %831 = vmatprep.subr.mxu0 0.0
  %832 = vmatpush1.xpose.msra.mxu0 0.0
  %833 = vmatprep.subr.mxu0 0.0
  %834 = vmatpush1.xpose.msra.mxu0 0.0
  %835 = vmatprep.subr.mxu0 0.0
  %836 = vmatpush1.xpose.msra.mxu0 0.0
  %837 = vmatprep.subr.mxu0 0.0
  %838 = vmatpush1.xpose.msra.mxu0 0.0
  %839 = vmatprep.subr.mxu0 0.0
  %840 = vmatpush1.xpose.msra.mxu0 0.0
  %841 = vmatprep.subr.mxu0 0.0
  %842 = vmatpush1.xpose.msra.mxu0 0.0
  %843 = vmatprep.subr.mxu0 0.0
  %844 = vmatpush1.xpose.msra.mxu0 0.0
  %845 = vmatprep.subr.mxu0 0.0
  %846 = vmatpush1.xpose.msra.mxu0 0.0
  %847 = vmatprep.subr.mxu0 0.0
  %848 = vmatpush1.xpose.msra.mxu0 0.0
  %849 = vmatprep.subr.mxu0 0.0
  %850 = vmatpush1.xpose.msra.mxu0 %v817
  %851 = vmatprep.subr.mxu0 0.0
  %852 = vmatpush2.xpose.msra.mxu0 0.0
  %853 = vmatprep.subr.mxu0 0.0
  %854 = vmatpush2.xpose.msra.mxu0 0.0
  %855 = vmatprep.subr.mxu0 0.0
  %856 = vmatpush2.xpose.msra.mxu0 0.0
  %857 = vmatprep.subr.mxu0 0.0
  %858 = vmatpush2.xpose.msra.mxu0 0.0
  %859 = vmatprep.subr.mxu0 0.0
  %860 = vmatpush2.xpose.msra.mxu0 0.0
  %861 = vmatprep.subr.mxu0 0.0
  %862 = vmatpush2.xpose.msra.mxu0 0.0
  %863 = vmatprep.subr.mxu0 0.0
  %864 = vmatpush2.xpose.msra.mxu0 0.0
  %865 = vmatprep.subr.mxu0 0.0
  %866 = vmatpush2.xpose.msra.mxu0 0.0
  %867 = vmatprep.subr.mxu0 0.0
  %868 = vmatpush2.xpose.msra.mxu0 0.0
  %869 = vmatprep.subr.mxu0 0.0
  %870 = vmatpush2.xpose.msra.mxu0 0.0
  %871 = vmatprep.subr.mxu0 0.0
  %872 = vmatpush2.xpose.msra.mxu0 0.0
  %873 = vmatprep.subr.mxu0 0.0
  %874 = vmatpush2.xpose.msra.mxu0 0.0
  %875 = vmatprep.subr.mxu0 0.0
  %876 = vmatpush2.xpose.msra.mxu0 0.0
  %877 = vmatprep.subr.mxu0 0.0
  %878 = vmatpush2.xpose.msra.mxu0 0.0
  %879 = vmatprep.subr.mxu0 0.0
  %880 = vmatpush2.xpose.msra.mxu0 0.0
  %881 = vmatprep.subr.mxu0 0.0
  %882 = vmatpush2.xpose.msra.mxu0 0.0
  %883 = vmatprep.mubr.f32.mxu0 0.0
  %884 = vmatmul.mubr.f32.gmra.mxu0 %v815
  %v885 = vpop.f32.mrf.mxu0
  %v886 = vadd.f32 0.0, %v885
  %v887 = vpop.f32.mrf.mxu0
  %888 = vdwg.mxu0
  %v889 = vcombine.low %v427, %v429
  %v890 = vcombine.low %v431, %v455
  %v892 = vunpack.c.l.s4 1966171168
  %v893 = vunpack.c.0.s8 %v892
  %v894 = vlaneseq
  %v895 = vshrl.u32 %v894, 7
  %v896 = vsub.s32 %v893, %v895
  %v897 = vrot.slane %v889, %v896
  %v899 = vunpack.c.l.s4 1966171168
  %v900 = vunpack.c.0.s8 %v899
  %v901 = vlaneseq
  %v902 = vshrl.u32 %v901, 7
  %v903 = vsub.s32 %v900, %v902
  %v904 = vrot.slane %v890, %v903
  %v906 = vunpack.c.l.s4 1966171168
  %v907 = vunpack.c.0.s8 %v906
  %v908 = vlaneseq
  %v909 = vshrl.u32 %v908, 7
  %v910 = vsub.s32 %v907, %v909
  %v911 = vrot.slane %v469, %v910
  %v912 = vcombine.low %v897, %v904
  %v914 = vunpack.c.l.s4 1966171168
  %v915 = vunpack.c.0.s8 %v914
  %v916 = vlaneseq
  %v917 = vshrl.u32 %v916, 7
  %v918 = vsub.s32 %v915, %v917
  %v919 = vrot.slane %v912, %v918
  %v921 = vunpack.c.l.s4 1966171168
  %v922 = vunpack.c.0.s8 %v921
  %v923 = vlaneseq
  %v924 = vshrl.u32 %v923, 7
  %v925 = vsub.s32 %v922, %v924
  %v926 = vrot.slane %v911, %v925
  %v927 = vcombine.low %v919, %v926
  %v928 = vsel %vm814, %v376, 0
  %v930 = vsel %vm814, %v927, 0
  %932 = vmatprep.subr.mxu0 0.0
  %933 = vmatpush1.xpose.msra.mxu0 0.0
  %934 = vmatprep.subr.mxu0 0.0
  %935 = vmatpush1.xpose.msra.mxu0 0.0
  %936 = vmatprep.subr.mxu0 0.0
  %937 = vmatpush1.xpose.msra.mxu0 0.0
  %938 = vmatprep.subr.mxu0 0.0
  %939 = vmatpush1.xpose.msra.mxu0 0.0
  %940 = vmatprep.subr.mxu0 0.0
  %941 = vmatpush1.xpose.msra.mxu0 0.0
  %942 = vmatprep.subr.mxu0 0.0
  %943 = vmatpush1.xpose.msra.mxu0 0.0
  %944 = vmatprep.subr.mxu0 0.0
  %945 = vmatpush1.xpose.msra.mxu0 0.0
  %946 = vmatprep.subr.mxu0 0.0
  %947 = vmatpush1.xpose.msra.mxu0 0.0
  %948 = vmatprep.subr.mxu0 0.0
  %949 = vmatpush1.xpose.msra.mxu0 0.0
  %950 = vmatprep.subr.mxu0 0.0
  %951 = vmatpush1.xpose.msra.mxu0 0.0
  %952 = vmatprep.subr.mxu0 0.0
  %953 = vmatpush1.xpose.msra.mxu0 0.0
  %954 = vmatprep.subr.mxu0 0.0
  %955 = vmatpush1.xpose.msra.mxu0 0.0
  %956 = vmatprep.subr.mxu0 0.0
  %957 = vmatpush1.xpose.msra.mxu0 0.0
  %958 = vmatprep.subr.mxu0 0.0
  %959 = vmatpush1.xpose.msra.mxu0 0.0
  %960 = vmatprep.subr.mxu0 0.0
  %961 = vmatpush1.xpose.msra.mxu0 0.0
  %962 = vmatprep.subr.mxu0 0.0
  %963 = vmatpush1.xpose.msra.mxu0 %v930
  %964 = vmatprep.subr.mxu0 0.0
  %965 = vmatpush2.xpose.msra.mxu0 0.0
  %966 = vmatprep.subr.mxu0 0.0
  %967 = vmatpush2.xpose.msra.mxu0 0.0
  %968 = vmatprep.subr.mxu0 0.0
  %969 = vmatpush2.xpose.msra.mxu0 0.0
  %970 = vmatprep.subr.mxu0 0.0
  %971 = vmatpush2.xpose.msra.mxu0 0.0
  %972 = vmatprep.subr.mxu0 0.0
  %973 = vmatpush2.xpose.msra.mxu0 0.0
  %974 = vmatprep.subr.mxu0 0.0
  %975 = vmatpush2.xpose.msra.mxu0 0.0
  %976 = vmatprep.subr.mxu0 0.0
  %977 = vmatpush2.xpose.msra.mxu0 0.0
  %978 = vmatprep.subr.mxu0 0.0
  %979 = vmatpush2.xpose.msra.mxu0 0.0
  %980 = vmatprep.subr.mxu0 0.0
  %981 = vmatpush2.xpose.msra.mxu0 0.0
  %982 = vmatprep.subr.mxu0 0.0
  %983 = vmatpush2.xpose.msra.mxu0 0.0
  %984 = vmatprep.subr.mxu0 0.0
  %985 = vmatpush2.xpose.msra.mxu0 0.0
  %986 = vmatprep.subr.mxu0 0.0
  %987 = vmatpush2.xpose.msra.mxu0 0.0
  %988 = vmatprep.subr.mxu0 0.0
  %989 = vmatpush2.xpose.msra.mxu0 0.0
  %990 = vmatprep.subr.mxu0 0.0
  %991 = vmatpush2.xpose.msra.mxu0 0.0
  %992 = vmatprep.subr.mxu0 0.0
  %993 = vmatpush2.xpose.msra.mxu0 0.0
  %994 = vmatprep.subr.mxu0 0.0
  %995 = vmatpush2.xpose.msra.mxu0 0.0
  %996 = vmatprep.mubr.f32.mxu0 0.0
  %997 = vmatmul.mubr.f32.gmra.mxu0 %v928
  %v998 = vpop.f32.mrf.mxu0
  %v999 = vadd.f32 0.0, %v998
  %v1000 = vpop.f32.mrf.mxu0
  %1001 = vdwg.mxu0
  %v1002 = vcombine.low %v477, %v479
  %v1003 = vcombine.low %v462, %v476
  %v1005 = vunpack.c.l.s4 1966171168
  %v1006 = vunpack.c.0.s8 %v1005
  %v1007 = vlaneseq
  %v1008 = vshrl.u32 %v1007, 7
  %v1009 = vsub.s32 %v1006, %v1008
  %v1010 = vrot.slane %v1002, %v1009
  %v1012 = vunpack.c.l.s4 1966171168
  %v1013 = vunpack.c.0.s8 %v1012
  %v1014 = vlaneseq
  %v1015 = vshrl.u32 %v1014, 7
  %v1016 = vsub.s32 %v1013, %v1015
  %v1017 = vrot.slane %v1003, %v1016
  %v1019 = vunpack.c.l.s4 1966171168
  %v1020 = vunpack.c.0.s8 %v1019
  %v1021 = vlaneseq
  %v1022 = vshrl.u32 %v1021, 7
  %v1023 = vsub.s32 %v1020, %v1022
  %v1024 = vrot.slane %v478, %v1023
  %v1025 = vcombine.low %v1010, %v1017
  %v1027 = vunpack.c.l.s4 1966171168
  %v1028 = vunpack.c.0.s8 %v1027
  %v1029 = vlaneseq
  %v1030 = vshrl.u32 %v1029, 7
  %v1031 = vsub.s32 %v1028, %v1030
  %v1032 = vrot.slane %v1025, %v1031
  %v1034 = vunpack.c.l.s4 1966171168
  %v1035 = vunpack.c.0.s8 %v1034
  %v1036 = vlaneseq
  %v1037 = vshrl.u32 %v1036, 7
  %v1038 = vsub.s32 %v1035, %v1037
  %v1039 = vrot.slane %v1024, %v1038
  %v1040 = vcombine.low %v1032, %v1039
  %v1041 = vsel %vm814, %v139, 0
  %v1043 = vsel %vm814, %v1040, 0
  %1045 = vmatprep.subr.mxu0 0.0
  %1046 = vmatpush1.xpose.msra.mxu0 0.0
  %1047 = vmatprep.subr.mxu0 0.0
  %1048 = vmatpush1.xpose.msra.mxu0 0.0
  %1049 = vmatprep.subr.mxu0 0.0
  %1050 = vmatpush1.xpose.msra.mxu0 0.0
  %1051 = vmatprep.subr.mxu0 0.0
  %1052 = vmatpush1.xpose.msra.mxu0 0.0
  %1053 = vmatprep.subr.mxu0 0.0
  %1054 = vmatpush1.xpose.msra.mxu0 0.0
  %1055 = vmatprep.subr.mxu0 0.0
  %1056 = vmatpush1.xpose.msra.mxu0 0.0
  %1057 = vmatprep.subr.mxu0 0.0
  %1058 = vmatpush1.xpose.msra.mxu0 0.0
  %1059 = vmatprep.subr.mxu0 0.0
  %1060 = vmatpush1.xpose.msra.mxu0 0.0
  %1061 = vmatprep.subr.mxu0 0.0
  %1062 = vmatpush1.xpose.msra.mxu0 0.0
  %1063 = vmatprep.subr.mxu0 0.0
  %1064 = vmatpush1.xpose.msra.mxu0 0.0
  %1065 = vmatprep.subr.mxu0 0.0
  %1066 = vmatpush1.xpose.msra.mxu0 0.0
  %1067 = vmatprep.subr.mxu0 0.0
  %1068 = vmatpush1.xpose.msra.mxu0 0.0
  %1069 = vmatprep.subr.mxu0 0.0
  %1070 = vmatpush1.xpose.msra.mxu0 0.0
  %1071 = vmatprep.subr.mxu0 0.0
  %1072 = vmatpush1.xpose.msra.mxu0 0.0
  %1073 = vmatprep.subr.mxu0 0.0
  %1074 = vmatpush1.xpose.msra.mxu0 0.0
  %1075 = vmatprep.subr.mxu0 0.0
  %1076 = vmatpush1.xpose.msra.mxu0 %v1043
  %1077 = vmatprep.subr.mxu0 0.0
  %1078 = vmatpush2.xpose.msra.mxu0 0.0
  %1079 = vmatprep.subr.mxu0 0.0
  %1080 = vmatpush2.xpose.msra.mxu0 0.0
  %1081 = vmatprep.subr.mxu0 0.0
  %1082 = vmatpush2.xpose.msra.mxu0 0.0
  %1083 = vmatprep.subr.mxu0 0.0
  %1084 = vmatpush2.xpose.msra.mxu0 0.0
  %1085 = vmatprep.subr.mxu0 0.0
  %1086 = vmatpush2.xpose.msra.mxu0 0.0
  %1087 = vmatprep.subr.mxu0 0.0
  %1088 = vmatpush2.xpose.msra.mxu0 0.0
  %1089 = vmatprep.subr.mxu0 0.0
  %1090 = vmatpush2.xpose.msra.mxu0 0.0
  %1091 = vmatprep.subr.mxu0 0.0
  %1092 = vmatpush2.xpose.msra.mxu0 0.0
  %1093 = vmatprep.subr.mxu0 0.0
  %1094 = vmatpush2.xpose.msra.mxu0 0.0
  %1095 = vmatprep.subr.mxu0 0.0
  %1096 = vmatpush2.xpose.msra.mxu0 0.0
  %1097 = vmatprep.subr.mxu0 0.0
  %1098 = vmatpush2.xpose.msra.mxu0 0.0
  %1099 = vmatprep.subr.mxu0 0.0
  %1100 = vmatpush2.xpose.msra.mxu0 0.0
  %1101 = vmatprep.subr.mxu0 0.0
  %1102 = vmatpush2.xpose.msra.mxu0 0.0
  %1103 = vmatprep.subr.mxu0 0.0
  %1104 = vmatpush2.xpose.msra.mxu0 0.0
  %1105 = vmatprep.subr.mxu0 0.0
  %1106 = vmatpush2.xpose.msra.mxu0 0.0
  %1107 = vmatprep.subr.mxu0 0.0
  %1108 = vmatpush2.xpose.msra.mxu0 0.0
  %1109 = vmatprep.mubr.f32.mxu0 0.0
  %1110 = vmatmul.mubr.f32.gmra.mxu0 %v1041
  %v1111 = vpop.f32.mrf.mxu0
  %v1112 = vadd.f32 0.0, %v1111
  %v1113 = vpop.f32.mrf.mxu0
  %1114 = vdwg.mxu0
  %v1115 = vcombine.low %v480, %v504
  %v1116 = vcombine.low %v518, %v526
  %v1118 = vunpack.c.l.s4 1966171168
  %v1119 = vunpack.c.0.s8 %v1118
  %v1120 = vlaneseq
  %v1121 = vshrl.u32 %v1120, 7
  %v1122 = vsub.s32 %v1119, %v1121
  %v1123 = vrot.slane %v1115, %v1122
  %v1125 = vunpack.c.l.s4 1966171168
  %v1126 = vunpack.c.0.s8 %v1125
  %v1127 = vlaneseq
  %v1128 = vshrl.u32 %v1127, 7
  %v1129 = vsub.s32 %v1126, %v1128
  %v1130 = vrot.slane %v1116, %v1129
  %v1132 = vunpack.c.l.s4 1966171168
  %v1133 = vunpack.c.0.s8 %v1132
  %v1134 = vlaneseq
  %v1135 = vshrl.u32 %v1134, 7
  %v1136 = vsub.s32 %v1133, %v1135
  %v1137 = vrot.slane %v528, %v1136
  %v1138 = vcombine.low %v1123, %v1130
  %v1140 = vunpack.c.l.s4 1966171168
  %v1141 = vunpack.c.0.s8 %v1140
  %v1142 = vlaneseq
  %v1143 = vshrl.u32 %v1142, 7
  %v1144 = vsub.s32 %v1141, %v1143
  %v1145 = vrot.slane %v1138, %v1144
  %v1147 = vunpack.c.l.s4 1966171168
  %v1148 = vunpack.c.0.s8 %v1147
  %v1149 = vlaneseq
  %v1150 = vshrl.u32 %v1149, 7
  %v1151 = vsub.s32 %v1148, %v1150
  %v1152 = vrot.slane %v1137, %v1151
  %v1153 = vcombine.low %v1145, %v1152
  %v1154 = vsel %vm814, %v377, 0
  %v1156 = vsel %vm814, %v1153, 0
  %1158 = vmatprep.subr.mxu0 0.0
  %1159 = vmatpush1.xpose.msra.mxu0 0.0
  %1160 = vmatprep.subr.mxu0 0.0
  %1161 = vmatpush1.xpose.msra.mxu0 0.0
  %1162 = vmatprep.subr.mxu0 0.0
  %1163 = vmatpush1.xpose.msra.mxu0 0.0
  %1164 = vmatprep.subr.mxu0 0.0
  %1165 = vmatpush1.xpose.msra.mxu0 0.0
  %1166 = vmatprep.subr.mxu0 0.0
  %1167 = vmatpush1.xpose.msra.mxu0 0.0
  %1168 = vmatprep.subr.mxu0 0.0
  %1169 = vmatpush1.xpose.msra.mxu0 0.0
  %1170 = vmatprep.subr.mxu0 0.0
  %1171 = vmatpush1.xpose.msra.mxu0 0.0
  %1172 = vmatprep.subr.mxu0 0.0
  %1173 = vmatpush1.xpose.msra.mxu0 0.0
  %1174 = vmatprep.subr.mxu0 0.0
  %1175 = vmatpush1.xpose.msra.mxu0 0.0
  %1176 = vmatprep.subr.mxu0 0.0
  %1177 = vmatpush1.xpose.msra.mxu0 0.0
  %1178 = vmatprep.subr.mxu0 0.0
  %1179 = vmatpush1.xpose.msra.mxu0 0.0
  %1180 = vmatprep.subr.mxu0 0.0
  %1181 = vmatpush1.xpose.msra.mxu0 0.0
  %1182 = vmatprep.subr.mxu0 0.0
  %1183 = vmatpush1.xpose.msra.mxu0 0.0
  %1184 = vmatprep.subr.mxu0 0.0
  %1185 = vmatpush1.xpose.msra.mxu0 0.0
  %1186 = vmatprep.subr.mxu0 0.0
  %1187 = vmatpush1.xpose.msra.mxu0 0.0
  %1188 = vmatprep.subr.mxu0 0.0
  %1189 = vmatpush1.xpose.msra.mxu0 %v1156
  %1190 = vmatprep.subr.mxu0 0.0
  %1191 = vmatpush2.xpose.msra.mxu0 0.0
  %1192 = vmatprep.subr.mxu0 0.0
  %1193 = vmatpush2.xpose.msra.mxu0 0.0
  %1194 = vmatprep.subr.mxu0 0.0
  %1195 = vmatpush2.xpose.msra.mxu0 0.0
  %1196 = vmatprep.subr.mxu0 0.0
  %1197 = vmatpush2.xpose.msra.mxu0 0.0
  %1198 = vmatprep.subr.mxu0 0.0
  %1199 = vmatpush2.xpose.msra.mxu0 0.0
  %1200 = vmatprep.subr.mxu0 0.0
  %1201 = vmatpush2.xpose.msra.mxu0 0.0
  %1202 = vmatprep.subr.mxu0 0.0
  %1203 = vmatpush2.xpose.msra.mxu0 0.0
  %1204 = vmatprep.subr.mxu0 0.0
  %1205 = vmatpush2.xpose.msra.mxu0 0.0
  %1206 = vmatprep.subr.mxu0 0.0
  %1207 = vmatpush2.xpose.msra.mxu0 0.0
  %1208 = vmatprep.subr.mxu0 0.0
  %1209 = vmatpush2.xpose.msra.mxu0 0.0
  %1210 = vmatprep.subr.mxu0 0.0
  %1211 = vmatpush2.xpose.msra.mxu0 0.0
  %1212 = vmatprep.subr.mxu0 0.0
  %1213 = vmatpush2.xpose.msra.mxu0 0.0
  %1214 = vmatprep.subr.mxu0 0.0
  %1215 = vmatpush2.xpose.msra.mxu0 0.0
  %1216 = vmatprep.subr.mxu0 0.0
  %1217 = vmatpush2.xpose.msra.mxu0 0.0
  %1218 = vmatprep.subr.mxu0 0.0
  %1219 = vmatpush2.xpose.msra.mxu0 0.0
  %1220 = vmatprep.subr.mxu0 0.0
  %1221 = vmatpush2.xpose.msra.mxu0 0.0
  %1222 = vmatprep.mubr.f32.mxu0 0.0
  %1223 = vmatmul.mubr.f32.gmra.mxu0 %v1154
  %v1224 = vpop.f32.mrf.mxu0
  %v1225 = vadd.f32 0.0, %v1224
  %v1226 = vpop.f32.mrf.mxu0
  %1227 = vdwg.mxu0
  %v1228 = vcombine.low %v511, %v525
  %v1229 = vcombine.low %v527, %v529
  %v1231 = vunpack.c.l.s4 1966171168
  %v1232 = vunpack.c.0.s8 %v1231
  %v1233 = vlaneseq
  %v1234 = vshrl.u32 %v1233, 7
  %v1235 = vsub.s32 %v1232, %v1234
  %v1236 = vrot.slane %v1228, %v1235
  %v1238 = vunpack.c.l.s4 1966171168
  %v1239 = vunpack.c.0.s8 %v1238
  %v1240 = vlaneseq
  %v1241 = vshrl.u32 %v1240, 7
  %v1242 = vsub.s32 %v1239, %v1241
  %v1243 = vrot.slane %v1229, %v1242
  %v1245 = vunpack.c.l.s4 1966171168
  %v1246 = vunpack.c.0.s8 %v1245
  %v1247 = vlaneseq
  %v1248 = vshrl.u32 %v1247, 7
  %v1249 = vsub.s32 %v1246, %v1248
  %v1250 = vrot.slane %v553, %v1249
  %v1251 = vcombine.low %v1236, %v1243
  %v1253 = vunpack.c.l.s4 1966171168
  %v1254 = vunpack.c.0.s8 %v1253
  %v1255 = vlaneseq
  %v1256 = vshrl.u32 %v1255, 7
  %v1257 = vsub.s32 %v1254, %v1256
  %v1258 = vrot.slane %v1251, %v1257
  %v1260 = vunpack.c.l.s4 1966171168
  %v1261 = vunpack.c.0.s8 %v1260
  %v1262 = vlaneseq
  %v1263 = vshrl.u32 %v1262, 7
  %v1264 = vsub.s32 %v1261, %v1263
  %v1265 = vrot.slane %v1250, %v1264
  %v1266 = vcombine.low %v1258, %v1265
  %v1267 = vsel %vm814, %v144, 0
  %v1269 = vsel %vm814, %v1266, 0
  %1271 = vmatprep.subr.mxu0 0.0
  %1272 = vmatpush1.xpose.msra.mxu0 0.0
  %1273 = vmatprep.subr.mxu0 0.0
  %1274 = vmatpush1.xpose.msra.mxu0 0.0
  %1275 = vmatprep.subr.mxu0 0.0
  %1276 = vmatpush1.xpose.msra.mxu0 0.0
  %1277 = vmatprep.subr.mxu0 0.0
  %1278 = vmatpush1.xpose.msra.mxu0 0.0
  %1279 = vmatprep.subr.mxu0 0.0
  %1280 = vmatpush1.xpose.msra.mxu0 0.0
  %1281 = vmatprep.subr.mxu0 0.0
  %1282 = vmatpush1.xpose.msra.mxu0 0.0
  %1283 = vmatprep.subr.mxu0 0.0
  %1284 = vmatpush1.xpose.msra.mxu0 0.0
  %1285 = vmatprep.subr.mxu0 0.0
  %1286 = vmatpush1.xpose.msra.mxu0 0.0
  %1287 = vmatprep.subr.mxu0 0.0
  %1288 = vmatpush1.xpose.msra.mxu0 0.0
  %1289 = vmatprep.subr.mxu0 0.0
  %1290 = vmatpush1.xpose.msra.mxu0 0.0
  %1291 = vmatprep.subr.mxu0 0.0
  %1292 = vmatpush1.xpose.msra.mxu0 0.0
  %1293 = vmatprep.subr.mxu0 0.0
  %1294 = vmatpush1.xpose.msra.mxu0 0.0
  %1295 = vmatprep.subr.mxu0 0.0
  %1296 = vmatpush1.xpose.msra.mxu0 0.0
  %1297 = vmatprep.subr.mxu0 0.0
  %1298 = vmatpush1.xpose.msra.mxu0 0.0
  %1299 = vmatprep.subr.mxu0 0.0
  %1300 = vmatpush1.xpose.msra.mxu0 0.0
  %1301 = vmatprep.subr.mxu0 0.0
  %1302 = vmatpush1.xpose.msra.mxu0 %v1269
  %1303 = vmatprep.subr.mxu0 0.0
  %1304 = vmatpush2.xpose.msra.mxu0 0.0
  %1305 = vmatprep.subr.mxu0 0.0
  %1306 = vmatpush2.xpose.msra.mxu0 0.0
  %1307 = vmatprep.subr.mxu0 0.0
  %1308 = vmatpush2.xpose.msra.mxu0 0.0
  %1309 = vmatprep.subr.mxu0 0.0
  %1310 = vmatpush2.xpose.msra.mxu0 0.0
  %1311 = vmatprep.subr.mxu0 0.0
  %1312 = vmatpush2.xpose.msra.mxu0 0.0
  %1313 = vmatprep.subr.mxu0 0.0
  %1314 = vmatpush2.xpose.msra.mxu0 0.0
  %1315 = vmatprep.subr.mxu0 0.0
  %1316 = vmatpush2.xpose.msra.mxu0 0.0
  %1317 = vmatprep.subr.mxu0 0.0
  %1318 = vmatpush2.xpose.msra.mxu0 0.0
  %1319 = vmatprep.subr.mxu0 0.0
  %1320 = vmatpush2.xpose.msra.mxu0 0.0
  %1321 = vmatprep.subr.mxu0 0.0
  %1322 = vmatpush2.xpose.msra.mxu0 0.0
  %1323 = vmatprep.subr.mxu0 0.0
  %1324 = vmatpush2.xpose.msra.mxu0 0.0
  %1325 = vmatprep.subr.mxu0 0.0
  %1326 = vmatpush2.xpose.msra.mxu0 0.0
  %1327 = vmatprep.subr.mxu0 0.0
  %1328 = vmatpush2.xpose.msra.mxu0 0.0
  %1329 = vmatprep.subr.mxu0 0.0
  %1330 = vmatpush2.xpose.msra.mxu0 0.0
  %1331 = vmatprep.subr.mxu0 0.0
  %1332 = vmatpush2.xpose.msra.mxu0 0.0
  %1333 = vmatprep.subr.mxu0 0.0
  %1334 = vmatpush2.xpose.msra.mxu0 0.0
  %1335 = vmatprep.mubr.f32.mxu0 0.0
  %1336 = vmatmul.mubr.f32.gmra.mxu0 %v1267
  %v1337 = vpop.f32.mrf.mxu0
  %v1338 = vadd.f32 0.0, %v1337
  %v1339 = vpop.f32.mrf.mxu0
  %1340 = vdwg.mxu0
  %v1341 = vcombine.low %v567, %v575
  %v1342 = vcombine.low %v576, %v560
  %v1344 = vunpack.c.l.s4 1966171168
  %v1345 = vunpack.c.0.s8 %v1344
  %v1346 = vlaneseq
  %v1347 = vshrl.u32 %v1346, 7
  %v1348 = vsub.s32 %v1345, %v1347
  %v1349 = vrot.slane %v1341, %v1348
  %v1351 = vunpack.c.l.s4 1966171168
  %v1352 = vunpack.c.0.s8 %v1351
  %v1353 = vlaneseq
  %v1354 = vshrl.u32 %v1353, 7
  %v1355 = vsub.s32 %v1352, %v1354
  %v1356 = vrot.slane %v1342, %v1355
  %v1358 = vunpack.c.l.s4 1966171168
  %v1359 = vunpack.c.0.s8 %v1358
  %v1360 = vlaneseq
  %v1361 = vshrl.u32 %v1360, 7
  %v1362 = vsub.s32 %v1359, %v1361
  %v1363 = vrot.slane %v574, %v1362
  %v1364 = vcombine.low %v1349, %v1356
  %v1366 = vunpack.c.l.s4 1966171168
  %v1367 = vunpack.c.0.s8 %v1366
  %v1368 = vlaneseq
  %v1369 = vshrl.u32 %v1368, 7
  %v1370 = vsub.s32 %v1367, %v1369
  %v1371 = vrot.slane %v1364, %v1370
  %v1373 = vunpack.c.l.s4 1966171168
  %v1374 = vunpack.c.0.s8 %v1373
  %v1375 = vlaneseq
  %v1376 = vshrl.u32 %v1375, 7
  %v1377 = vsub.s32 %v1374, %v1376
  %v1378 = vrot.slane %v1363, %v1377
  %v1379 = vcombine.low %v1371, %v1378
  %v1380 = vsel %vm814, %v378, 0
  %v1382 = vsel %vm814, %v1379, 0
  %1384 = vmatprep.subr.mxu0 0.0
  %1385 = vmatpush1.xpose.msra.mxu0 0.0
  %1386 = vmatprep.subr.mxu0 0.0
  %1387 = vmatpush1.xpose.msra.mxu0 0.0
  %1388 = vmatprep.subr.mxu0 0.0
  %1389 = vmatpush1.xpose.msra.mxu0 0.0
  %1390 = vmatprep.subr.mxu0 0.0
  %1391 = vmatpush1.xpose.msra.mxu0 0.0
  %1392 = vmatprep.subr.mxu0 0.0
  %1393 = vmatpush1.xpose.msra.mxu0 0.0
  %1394 = vmatprep.subr.mxu0 0.0
  %1395 = vmatpush1.xpose.msra.mxu0 0.0
  %1396 = vmatprep.subr.mxu0 0.0
  %1397 = vmatpush1.xpose.msra.mxu0 0.0
  %1398 = vmatprep.subr.mxu0 0.0
  %1399 = vmatpush1.xpose.msra.mxu0 0.0
  %1400 = vmatprep.subr.mxu0 0.0
  %1401 = vmatpush1.xpose.msra.mxu0 0.0
  %1402 = vmatprep.subr.mxu0 0.0
  %1403 = vmatpush1.xpose.msra.mxu0 0.0
  %1404 = vmatprep.subr.mxu0 0.0
  %1405 = vmatpush1.xpose.msra.mxu0 0.0
  %1406 = vmatprep.subr.mxu0 0.0
  %1407 = vmatpush1.xpose.msra.mxu0 0.0
  %1408 = vmatprep.subr.mxu0 0.0
  %1409 = vmatpush1.xpose.msra.mxu0 0.0
  %1410 = vmatprep.subr.mxu0 0.0
  %1411 = vmatpush1.xpose.msra.mxu0 0.0
  %1412 = vmatprep.subr.mxu0 0.0
  %1413 = vmatpush1.xpose.msra.mxu0 0.0
  %1414 = vmatprep.subr.mxu0 0.0
  %1415 = vmatpush1.xpose.msra.mxu0 %v1382
  %1416 = vmatprep.subr.mxu0 0.0
  %1417 = vmatpush2.xpose.msra.mxu0 0.0
  %1418 = vmatprep.subr.mxu0 0.0
  %1419 = vmatpush2.xpose.msra.mxu0 0.0
  %1420 = vmatprep.subr.mxu0 0.0
  %1421 = vmatpush2.xpose.msra.mxu0 0.0
  %1422 = vmatprep.subr.mxu0 0.0
  %1423 = vmatpush2.xpose.msra.mxu0 0.0
  %1424 = vmatprep.subr.mxu0 0.0
  %1425 = vmatpush2.xpose.msra.mxu0 0.0
  %1426 = vmatprep.subr.mxu0 0.0
  %1427 = vmatpush2.xpose.msra.mxu0 0.0
  %1428 = vmatprep.subr.mxu0 0.0
  %1429 = vmatpush2.xpose.msra.mxu0 0.0
  %1430 = vmatprep.subr.mxu0 0.0
  %1431 = vmatpush2.xpose.msra.mxu0 0.0
  %1432 = vmatprep.subr.mxu0 0.0
  %1433 = vmatpush2.xpose.msra.mxu0 0.0
  %1434 = vmatprep.subr.mxu0 0.0
  %1435 = vmatpush2.xpose.msra.mxu0 0.0
  %1436 = vmatprep.subr.mxu0 0.0
  %1437 = vmatpush2.xpose.msra.mxu0 0.0
  %1438 = vmatprep.subr.mxu0 0.0
  %1439 = vmatpush2.xpose.msra.mxu0 0.0
  %1440 = vmatprep.subr.mxu0 0.0
  %1441 = vmatpush2.xpose.msra.mxu0 0.0
  %1442 = vmatprep.subr.mxu0 0.0
  %1443 = vmatpush2.xpose.msra.mxu0 0.0
  %1444 = vmatprep.subr.mxu0 0.0
  %1445 = vmatpush2.xpose.msra.mxu0 0.0
  %1446 = vmatprep.subr.mxu0 0.0
  %1447 = vmatpush2.xpose.msra.mxu0 0.0
  %1448 = vmatprep.mubr.f32.mxu0 0.0
  %1449 = vmatmul.mubr.f32.gmra.mxu0 %v1380
  %v1450 = vpop.f32.mrf.mxu0
  %v1451 = vadd.f32 0.0, %v1450
  %v1452 = vpop.f32.mrf.mxu0
  %1453 = vdwg.mxu0
  %v1454 = vmul.f32 %v886, 1.264911
  %v1455 = vmul.f32 %v999, 1.264911
  %v1456 = vmul.f32 %v1112, 1.264911
  %v1457 = vmul.f32 %v1225, 1.264911
  %v1458 = vmul.f32 %v1338, 1.264911
  %v1459 = vmul.f32 %v1451, 1.264911
  %vm1460 = vcmask 35840
  %v1461 = vsel %vm1460, %v1454, -inf
  %1462 = vmax.xlane.f32.xlu0 %v1461
  %v1463 = vpop.xlane.xlu0 %1462
  %v1464 = vsel %vm1460, %v1455, -inf
  %1465 = vmax.xlane.f32.xlu0 %v1464
  %v1466 = vpop.xlane.xlu0 %1465
  %v1467 = vsel %vm1460, %v1456, -inf
  %1468 = vmax.xlane.f32.xlu0 %v1467
  %v1469 = vpop.xlane.xlu0 %1468
  %v1470 = vsel %vm1460, %v1457, -inf
  %1471 = vmax.xlane.f32.xlu0 %v1470
  %v1472 = vpop.xlane.xlu0 %1471
  %v1473 = vsel %vm1460, %v1458, -inf
  %1474 = vmax.xlane.f32.xlu0 %v1473
  %v1475 = vpop.xlane.xlu0 %1474
  %v1476 = vsel %vm1460, %v1459, -inf
  %1477 = vmax.xlane.f32.xlu0 %v1476
  %v1478 = vpop.xlane.xlu0 %1477
  %v1479 = vsub.f32 %v1454, %v1463
  %v1480 = vsub.f32 %v1455, %v1466
  %v1481 = vsub.f32 %v1456, %v1469
  %v1482 = vsub.f32 %v1457, %v1472
  %v1483 = vsub.f32 %v1458, %v1475
  %v1484 = vsub.f32 %v1459, %v1478
  %v1485 = vmul.f32 %v1479, 1.442695
  %v1486 = vpow.pop %v1485
  %v1487 = vmul.f32 %v1480, 1.442695
  %v1488 = vpow.pop %v1487
  %v1489 = vmul.f32 %v1481, 1.442695
  %v1490 = vpow.pop %v1489
  %v1491 = vmul.f32 %v1482, 1.442695
  %v1492 = vpow.pop %v1491
  %v1493 = vmul.f32 %v1483, 1.442695
  %v1494 = vpow.pop %v1493
  %v1495 = vmul.f32 %v1484, 1.442695
  %v1496 = vpow.pop %v1495
  %v1497 = vsel %vm1460, %v1486, 0.0
  %1498 = vadd.xlane.f32.xlu0 %v1497
  %v1499 = vpop.xlane.xlu0 %1498
  %v1500 = vsel %vm1460, %v1488, 0.0
  %1501 = vadd.xlane.f32.xlu0 %v1500
  %v1502 = vpop.xlane.xlu0 %1501
  %v1503 = vsel %vm1460, %v1490, 0.0
  %1504 = vadd.xlane.f32.xlu0 %v1503
  %v1505 = vpop.xlane.xlu0 %1504
  %v1506 = vsel %vm1460, %v1492, 0.0
  %1507 = vadd.xlane.f32.xlu0 %v1506
  %v1508 = vpop.xlane.xlu0 %1507
  %v1509 = vsel %vm1460, %v1494, 0.0
  %1510 = vadd.xlane.f32.xlu0 %v1509
  %v1511 = vpop.xlane.xlu0 %1510
  %v1512 = vsel %vm1460, %v1496, 0.0
  %1513 = vadd.xlane.f32.xlu0 %v1512
  %v1514 = vpop.xlane.xlu0 %1513
  %v1515 = vrcp.pop %v1499
  %v1516 = vmul.f32 %v1486, %v1515
  %v1517 = vrcp.pop %v1502
  %v1518 = vmul.f32 %v1488, %v1517
  %v1519 = vrcp.pop %v1505
  %v1520 = vmul.f32 %v1490, %v1519
  %v1521 = vrcp.pop %v1508
  %v1522 = vmul.f32 %v1492, %v1521
  %v1523 = vrcp.pop %v1511
  %v1524 = vmul.f32 %v1494, %v1523
  %v1525 = vrcp.pop %v1514
  %v1526 = vmul.f32 %v1496, %v1525
  %v1527 = vld [vmem:[%s3] sm:$0xf]
  %v1528 = vld [vmem:[%s3 + $0x4] sm:$0xf]
  %v1529 = vld [vmem:[%s3 + $0x8] sm:$0xf]
  %v1530 = vld [vmem:[%s3 + $0xc] sm:$0xf]
  %v1531 = vld [vmem:[%s3 + $0x10] sm:$0xf]
  %v1532 = vld [vmem:[%s3 + $0x14] sm:$0xf]
  %vm1533 = vcmp.ge.f32.partialorder %v1527, 0.5
  %vm1534 = vcmp.ge.f32.partialorder %v1528, 0.5
  %vm1535 = vcmp.ge.f32.partialorder %v1529, 0.5
  %vm1536 = vcmp.ge.f32.partialorder %v1530, 0.5
  %vm1537 = vcmp.ge.f32.partialorder %v1531, 0.5
  %vm1538 = vcmp.ge.f32.partialorder %v1532, 0.5
  %v1539 = vmul.f32 %v1516, 2.0
  %v1540 = vmul.f32 %v1518, 2.0
  %v1541 = vmul.f32 %v1520, 2.0
  %v1542 = vmul.f32 %v1522, 2.0
  %v1543 = vmul.f32 %v1524, 2.0
  %v1544 = vmul.f32 %v1526, 2.0
  %v1545 = vsel %vm1533, %v1539, 0.0
  %v1546 = vsel %vm1534, %v1540, 0.0
  %v1547 = vsel %vm1535, %v1541, 0.0
  %v1548 = vsel %vm1536, %v1542, 0.0
  %v1549 = vsel %vm1537, %v1543, 0.0
  %v1550 = vsel %vm1538, %v1544, 0.0
  %v1551 = vcombine.low %v604, %v618
  %v1552 = vcombine.low %v626, %v628
  %v1554 = vunpack.c.l.s4 1966171168
  %v1555 = vunpack.c.0.s8 %v1554
  %v1556 = vlaneseq
  %v1557 = vshrl.u32 %v1556, 7
  %v1558 = vsub.s32 %v1555, %v1557
  %v1559 = vrot.slane %v1551, %v1558
  %v1561 = vunpack.c.l.s4 1966171168
  %v1562 = vunpack.c.0.s8 %v1561
  %v1563 = vlaneseq
  %v1564 = vshrl.u32 %v1563, 7
  %v1565 = vsub.s32 %v1562, %v1564
  %v1566 = vrot.slane %v1552, %v1565
  %v1568 = vunpack.c.l.s4 1966171168
  %v1569 = vunpack.c.0.s8 %v1568
  %v1570 = vlaneseq
  %v1571 = vshrl.u32 %v1570, 7
  %v1572 = vsub.s32 %v1569, %v1571
  %v1573 = vrot.slane %v611, %v1572
  %v1574 = vcombine.low %v1559, %v1566
  %v1576 = vunpack.c.l.s4 1966171168
  %v1577 = vunpack.c.0.s8 %v1576
  %v1578 = vlaneseq
  %v1579 = vshrl.u32 %v1578, 7
  %v1580 = vsub.s32 %v1577, %v1579
  %v1581 = vrot.slane %v1574, %v1580
  %v1583 = vunpack.c.l.s4 1966171168
  %v1584 = vunpack.c.0.s8 %v1583
  %v1585 = vlaneseq
  %v1586 = vshrl.u32 %v1585, 7
  %v1587 = vsub.s32 %v1584, %v1586
  %v1588 = vrot.slane %v1573, %v1587
  %v1589 = vcombine.low %v1581, %v1588
  %v1591 = vsel %vm814, %v1545, 0
  %vm1593 = vcmask 1044480
  %v1594 = vsel %vm1593, %v1589, 0
  %1596 = vmatprep.subr.mxu0 0.0
  %1597 = vmatpush1.msra.mxu0 0.0
  %1598 = vmatprep.subr.mxu0 0.0
  %1599 = vmatpush1.msra.mxu0 0.0
  %1600 = vmatprep.subr.mxu0 0.0
  %1601 = vmatpush1.msra.mxu0 0.0
  %1602 = vmatprep.subr.mxu0 0.0
  %1603 = vmatpush1.msra.mxu0 0.0
  %1604 = vmatprep.subr.mxu0 0.0
  %1605 = vmatpush1.msra.mxu0 0.0
  %1606 = vmatprep.subr.mxu0 0.0
  %1607 = vmatpush1.msra.mxu0 0.0
  %1608 = vmatprep.subr.mxu0 0.0
  %1609 = vmatpush1.msra.mxu0 0.0
  %1610 = vmatprep.subr.mxu0 0.0
  %1611 = vmatpush1.msra.mxu0 0.0
  %1612 = vmatprep.subr.mxu0 0.0
  %1613 = vmatpush1.msra.mxu0 0.0
  %1614 = vmatprep.subr.mxu0 0.0
  %1615 = vmatpush1.msra.mxu0 0.0
  %1616 = vmatprep.subr.mxu0 0.0
  %1617 = vmatpush1.msra.mxu0 0.0
  %1618 = vmatprep.subr.mxu0 0.0
  %1619 = vmatpush1.msra.mxu0 0.0
  %1620 = vmatprep.subr.mxu0 0.0
  %1621 = vmatpush1.msra.mxu0 0.0
  %1622 = vmatprep.subr.mxu0 0.0
  %1623 = vmatpush1.msra.mxu0 0.0
  %1624 = vmatprep.subr.mxu0 0.0
  %1625 = vmatpush1.msra.mxu0 0.0
  %1626 = vmatprep.subr.mxu0 0.0
  %1627 = vmatpush1.msra.mxu0 %v1594
  %1628 = vmatprep.subr.mxu0 0.0
  %1629 = vmatpush2.msra.mxu0 0.0
  %1630 = vmatprep.subr.mxu0 0.0
  %1631 = vmatpush2.msra.mxu0 0.0
  %1632 = vmatprep.subr.mxu0 0.0
  %1633 = vmatpush2.msra.mxu0 0.0
  %1634 = vmatprep.subr.mxu0 0.0
  %1635 = vmatpush2.msra.mxu0 0.0
  %1636 = vmatprep.subr.mxu0 0.0
  %1637 = vmatpush2.msra.mxu0 0.0
  %1638 = vmatprep.subr.mxu0 0.0
  %1639 = vmatpush2.msra.mxu0 0.0
  %1640 = vmatprep.subr.mxu0 0.0
  %1641 = vmatpush2.msra.mxu0 0.0
  %1642 = vmatprep.subr.mxu0 0.0
  %1643 = vmatpush2.msra.mxu0 0.0
  %1644 = vmatprep.subr.mxu0 0.0
  %1645 = vmatpush2.msra.mxu0 0.0
  %1646 = vmatprep.subr.mxu0 0.0
  %1647 = vmatpush2.msra.mxu0 0.0
  %1648 = vmatprep.subr.mxu0 0.0
  %1649 = vmatpush2.msra.mxu0 0.0
  %1650 = vmatprep.subr.mxu0 0.0
  %1651 = vmatpush2.msra.mxu0 0.0
  %1652 = vmatprep.subr.mxu0 0.0
  %1653 = vmatpush2.msra.mxu0 0.0
  %1654 = vmatprep.subr.mxu0 0.0
  %1655 = vmatpush2.msra.mxu0 0.0
  %1656 = vmatprep.subr.mxu0 0.0
  %1657 = vmatpush2.msra.mxu0 0.0
  %1658 = vmatprep.subr.mxu0 0.0
  %1659 = vmatpush2.msra.mxu0 0.0
  %1660 = vmatprep.mubr.f32.mxu0 0.0
  %1661 = vmatmul.mubr.f32.gmra.mxu0 %v1591
  %v1662 = vpop.f32.mrf.mxu0
  %v1663 = vadd.f32 0.0, %v1662
  %v1664 = vpop.f32.mrf.mxu0
  %1665 = vdwg.mxu0
  %v1666 = vcombine.low %v625, %v627
  %v1667 = vcombine.low %v629, %v653
  %v1669 = vunpack.c.l.s4 1966171168
  %v1670 = vunpack.c.0.s8 %v1669
  %v1671 = vlaneseq
  %v1672 = vshrl.u32 %v1671, 7
  %v1673 = vsub.s32 %v1670, %v1672
  %v1674 = vrot.slane %v1666, %v1673
  %v1676 = vunpack.c.l.s4 1966171168
  %v1677 = vunpack.c.0.s8 %v1676
  %v1678 = vlaneseq
  %v1679 = vshrl.u32 %v1678, 7
  %v1680 = vsub.s32 %v1677, %v1679
  %v1681 = vrot.slane %v1667, %v1680
  %v1683 = vunpack.c.l.s4 1966171168
  %v1684 = vunpack.c.0.s8 %v1683
  %v1685 = vlaneseq
  %v1686 = vshrl.u32 %v1685, 7
  %v1687 = vsub.s32 %v1684, %v1686
  %v1688 = vrot.slane %v667, %v1687
  %v1689 = vcombine.low %v1674, %v1681
  %v1691 = vunpack.c.l.s4 1966171168
  %v1692 = vunpack.c.0.s8 %v1691
  %v1693 = vlaneseq
  %v1694 = vshrl.u32 %v1693, 7
  %v1695 = vsub.s32 %v1692, %v1694
  %v1696 = vrot.slane %v1689, %v1695
  %v1698 = vunpack.c.l.s4 1966171168
  %v1699 = vunpack.c.0.s8 %v1698
  %v1700 = vlaneseq
  %v1701 = vshrl.u32 %v1700, 7
  %v1702 = vsub.s32 %v1699, %v1701
  %v1703 = vrot.slane %v1688, %v1702
  %v1704 = vcombine.low %v1696, %v1703
  %v1706 = vsel %vm814, %v1546, 0
  %v1708 = vsel %vm1593, %v1704, 0
  %1710 = vmatprep.subr.mxu0 0.0
  %1711 = vmatpush1.msra.mxu0 0.0
  %1712 = vmatprep.subr.mxu0 0.0
  %1713 = vmatpush1.msra.mxu0 0.0
  %1714 = vmatprep.subr.mxu0 0.0
  %1715 = vmatpush1.msra.mxu0 0.0
  %1716 = vmatprep.subr.mxu0 0.0
  %1717 = vmatpush1.msra.mxu0 0.0
  %1718 = vmatprep.subr.mxu0 0.0
  %1719 = vmatpush1.msra.mxu0 0.0
  %1720 = vmatprep.subr.mxu0 0.0
  %1721 = vmatpush1.msra.mxu0 0.0
  %1722 = vmatprep.subr.mxu0 0.0
  %1723 = vmatpush1.msra.mxu0 0.0
  %1724 = vmatprep.subr.mxu0 0.0
  %1725 = vmatpush1.msra.mxu0 0.0
  %1726 = vmatprep.subr.mxu0 0.0
  %1727 = vmatpush1.msra.mxu0 0.0
  %1728 = vmatprep.subr.mxu0 0.0
  %1729 = vmatpush1.msra.mxu0 0.0
  %1730 = vmatprep.subr.mxu0 0.0
  %1731 = vmatpush1.msra.mxu0 0.0
  %1732 = vmatprep.subr.mxu0 0.0
  %1733 = vmatpush1.msra.mxu0 0.0
  %1734 = vmatprep.subr.mxu0 0.0
  %1735 = vmatpush1.msra.mxu0 0.0
  %1736 = vmatprep.subr.mxu0 0.0
  %1737 = vmatpush1.msra.mxu0 0.0
  %1738 = vmatprep.subr.mxu0 0.0
  %1739 = vmatpush1.msra.mxu0 0.0
  %1740 = vmatprep.subr.mxu0 0.0
  %1741 = vmatpush1.msra.mxu0 %v1708
  %1742 = vmatprep.subr.mxu0 0.0
  %1743 = vmatpush2.msra.mxu0 0.0
  %1744 = vmatprep.subr.mxu0 0.0
  %1745 = vmatpush2.msra.mxu0 0.0
  %1746 = vmatprep.subr.mxu0 0.0
  %1747 = vmatpush2.msra.mxu0 0.0
  %1748 = vmatprep.subr.mxu0 0.0
  %1749 = vmatpush2.msra.mxu0 0.0
  %1750 = vmatprep.subr.mxu0 0.0
  %1751 = vmatpush2.msra.mxu0 0.0
  %1752 = vmatprep.subr.mxu0 0.0
  %1753 = vmatpush2.msra.mxu0 0.0
  %1754 = vmatprep.subr.mxu0 0.0
  %1755 = vmatpush2.msra.mxu0 0.0
  %1756 = vmatprep.subr.mxu0 0.0
  %1757 = vmatpush2.msra.mxu0 0.0
  %1758 = vmatprep.subr.mxu0 0.0
  %1759 = vmatpush2.msra.mxu0 0.0
  %1760 = vmatprep.subr.mxu0 0.0
  %1761 = vmatpush2.msra.mxu0 0.0
  %1762 = vmatprep.subr.mxu0 0.0
  %1763 = vmatpush2.msra.mxu0 0.0
  %1764 = vmatprep.subr.mxu0 0.0
  %1765 = vmatpush2.msra.mxu0 0.0
  %1766 = vmatprep.subr.mxu0 0.0
  %1767 = vmatpush2.msra.mxu0 0.0
  %1768 = vmatprep.subr.mxu0 0.0
  %1769 = vmatpush2.msra.mxu0 0.0
  %1770 = vmatprep.subr.mxu0 0.0
  %1771 = vmatpush2.msra.mxu0 0.0
  %1772 = vmatprep.subr.mxu0 0.0
  %1773 = vmatpush2.msra.mxu0 0.0
  %1774 = vmatprep.mubr.f32.mxu0 0.0
  %1775 = vmatmul.mubr.f32.gmra.mxu0 %v1706
  %v1776 = vpop.f32.mrf.mxu0
  %v1777 = vadd.f32 0.0, %v1776
  %v1778 = vpop.f32.mrf.mxu0
  %1779 = vdwg.mxu0
  %v1780 = vcombine.low %v675, %v677
  %v1781 = vcombine.low %v660, %v674
  %v1783 = vunpack.c.l.s4 1966171168
  %v1784 = vunpack.c.0.s8 %v1783
  %v1785 = vlaneseq
  %v1786 = vshrl.u32 %v1785, 7
  %v1787 = vsub.s32 %v1784, %v1786
  %v1788 = vrot.slane %v1780, %v1787
  %v1790 = vunpack.c.l.s4 1966171168
  %v1791 = vunpack.c.0.s8 %v1790
  %v1792 = vlaneseq
  %v1793 = vshrl.u32 %v1792, 7
  %v1794 = vsub.s32 %v1791, %v1793
  %v1795 = vrot.slane %v1781, %v1794
  %v1797 = vunpack.c.l.s4 1966171168
  %v1798 = vunpack.c.0.s8 %v1797
  %v1799 = vlaneseq
  %v1800 = vshrl.u32 %v1799, 7
  %v1801 = vsub.s32 %v1798, %v1800
  %v1802 = vrot.slane %v676, %v1801
  %v1803 = vcombine.low %v1788, %v1795
  %v1805 = vunpack.c.l.s4 1966171168
  %v1806 = vunpack.c.0.s8 %v1805
  %v1807 = vlaneseq
  %v1808 = vshrl.u32 %v1807, 7
  %v1809 = vsub.s32 %v1806, %v1808
  %v1810 = vrot.slane %v1803, %v1809
  %v1812 = vunpack.c.l.s4 1966171168
  %v1813 = vunpack.c.0.s8 %v1812
  %v1814 = vlaneseq
  %v1815 = vshrl.u32 %v1814, 7
  %v1816 = vsub.s32 %v1813, %v1815
  %v1817 = vrot.slane %v1802, %v1816
  %v1818 = vcombine.low %v1810, %v1817
  %v1820 = vsel %vm814, %v1547, 0
  %v1822 = vsel %vm1593, %v1818, 0
  %1824 = vmatprep.subr.mxu0 0.0
  %1825 = vmatpush1.msra.mxu0 0.0
  %1826 = vmatprep.subr.mxu0 0.0
  %1827 = vmatpush1.msra.mxu0 0.0
  %1828 = vmatprep.subr.mxu0 0.0
  %1829 = vmatpush1.msra.mxu0 0.0
  %1830 = vmatprep.subr.mxu0 0.0
  %1831 = vmatpush1.msra.mxu0 0.0
  %1832 = vmatprep.subr.mxu0 0.0
  %1833 = vmatpush1.msra.mxu0 0.0
  %1834 = vmatprep.subr.mxu0 0.0
  %1835 = vmatpush1.msra.mxu0 0.0
  %1836 = vmatprep.subr.mxu0 0.0
  %1837 = vmatpush1.msra.mxu0 0.0
  %1838 = vmatprep.subr.mxu0 0.0
  %1839 = vmatpush1.msra.mxu0 0.0
  %1840 = vmatprep.subr.mxu0 0.0
  %1841 = vmatpush1.msra.mxu0 0.0
  %1842 = vmatprep.subr.mxu0 0.0
  %1843 = vmatpush1.msra.mxu0 0.0
  %1844 = vmatprep.subr.mxu0 0.0
  %1845 = vmatpush1.msra.mxu0 0.0
  %1846 = vmatprep.subr.mxu0 0.0
  %1847 = vmatpush1.msra.mxu0 0.0
  %1848 = vmatprep.subr.mxu0 0.0
  %1849 = vmatpush1.msra.mxu0 0.0
  %1850 = vmatprep.subr.mxu0 0.0
  %1851 = vmatpush1.msra.mxu0 0.0
  %1852 = vmatprep.subr.mxu0 0.0
  %1853 = vmatpush1.msra.mxu0 0.0
  %1854 = vmatprep.subr.mxu0 0.0
  %1855 = vmatpush1.msra.mxu0 %v1822
  %1856 = vmatprep.subr.mxu0 0.0
  %1857 = vmatpush2.msra.mxu0 0.0
  %1858 = vmatprep.subr.mxu0 0.0
  %1859 = vmatpush2.msra.mxu0 0.0
  %1860 = vmatprep.subr.mxu0 0.0
  %1861 = vmatpush2.msra.mxu0 0.0
  %1862 = vmatprep.subr.mxu0 0.0
  %1863 = vmatpush2.msra.mxu0 0.0
  %1864 = vmatprep.subr.mxu0 0.0
  %1865 = vmatpush2.msra.mxu0 0.0
  %1866 = vmatprep.subr.mxu0 0.0
  %1867 = vmatpush2.msra.mxu0 0.0
  %1868 = vmatprep.subr.mxu0 0.0
  %1869 = vmatpush2.msra.mxu0 0.0
  %1870 = vmatprep.subr.mxu0 0.0
  %1871 = vmatpush2.msra.mxu0 0.0
  %1872 = vmatprep.subr.mxu0 0.0
  %1873 = vmatpush2.msra.mxu0 0.0
  %1874 = vmatprep.subr.mxu0 0.0
  %1875 = vmatpush2.msra.mxu0 0.0
  %1876 = vmatprep.subr.mxu0 0.0
  %1877 = vmatpush2.msra.mxu0 0.0
  %1878 = vmatprep.subr.mxu0 0.0
  %1879 = vmatpush2.msra.mxu0 0.0
  %1880 = vmatprep.subr.mxu0 0.0
  %1881 = vmatpush2.msra.mxu0 0.0
  %1882 = vmatprep.subr.mxu0 0.0
  %1883 = vmatpush2.msra.mxu0 0.0
  %1884 = vmatprep.subr.mxu0 0.0
  %1885 = vmatpush2.msra.mxu0 0.0
  %1886 = vmatprep.subr.mxu0 0.0
  %1887 = vmatpush2.msra.mxu0 0.0
  %1888 = vmatprep.mubr.f32.mxu0 0.0
  %1889 = vmatmul.mubr.f32.gmra.mxu0 %v1820
  %v1890 = vpop.f32.mrf.mxu0
  %v1891 = vadd.f32 0.0, %v1890
  %v1892 = vpop.f32.mrf.mxu0
  %1893 = vdwg.mxu0
  %v1894 = vcombine.low %v678, %v702
  %v1895 = vcombine.low %v716, %v724
  %v1897 = vunpack.c.l.s4 1966171168
  %v1898 = vunpack.c.0.s8 %v1897
  %v1899 = vlaneseq
  %v1900 = vshrl.u32 %v1899, 7
  %v1901 = vsub.s32 %v1898, %v1900
  %v1902 = vrot.slane %v1894, %v1901
  %v1904 = vunpack.c.l.s4 1966171168
  %v1905 = vunpack.c.0.s8 %v1904
  %v1906 = vlaneseq
  %v1907 = vshrl.u32 %v1906, 7
  %v1908 = vsub.s32 %v1905, %v1907
  %v1909 = vrot.slane %v1895, %v1908
  %v1911 = vunpack.c.l.s4 1966171168
  %v1912 = vunpack.c.0.s8 %v1911
  %v1913 = vlaneseq
  %v1914 = vshrl.u32 %v1913, 7
  %v1915 = vsub.s32 %v1912, %v1914
  %v1916 = vrot.slane %v726, %v1915
  %v1917 = vcombine.low %v1902, %v1909
  %v1919 = vunpack.c.l.s4 1966171168
  %v1920 = vunpack.c.0.s8 %v1919
  %v1921 = vlaneseq
  %v1922 = vshrl.u32 %v1921, 7
  %v1923 = vsub.s32 %v1920, %v1922
  %v1924 = vrot.slane %v1917, %v1923
  %v1926 = vunpack.c.l.s4 1966171168
  %v1927 = vunpack.c.0.s8 %v1926
  %v1928 = vlaneseq
  %v1929 = vshrl.u32 %v1928, 7
  %v1930 = vsub.s32 %v1927, %v1929
  %v1931 = vrot.slane %v1916, %v1930
  %v1932 = vcombine.low %v1924, %v1931
  %v1934 = vsel %vm814, %v1548, 0
  %v1936 = vsel %vm1593, %v1932, 0
  %1938 = vmatprep.subr.mxu0 0.0
  %1939 = vmatpush1.msra.mxu0 0.0
  %1940 = vmatprep.subr.mxu0 0.0
  %1941 = vmatpush1.msra.mxu0 0.0
  %1942 = vmatprep.subr.mxu0 0.0
  %1943 = vmatpush1.msra.mxu0 0.0
  %1944 = vmatprep.subr.mxu0 0.0
  %1945 = vmatpush1.msra.mxu0 0.0
  %1946 = vmatprep.subr.mxu0 0.0
  %1947 = vmatpush1.msra.mxu0 0.0
  %1948 = vmatprep.subr.mxu0 0.0
  %1949 = vmatpush1.msra.mxu0 0.0
  %1950 = vmatprep.subr.mxu0 0.0
  %1951 = vmatpush1.msra.mxu0 0.0
  %1952 = vmatprep.subr.mxu0 0.0
  %1953 = vmatpush1.msra.mxu0 0.0
  %1954 = vmatprep.subr.mxu0 0.0
  %1955 = vmatpush1.msra.mxu0 0.0
  %1956 = vmatprep.subr.mxu0 0.0
  %1957 = vmatpush1.msra.mxu0 0.0
  %1958 = vmatprep.subr.mxu0 0.0
  %1959 = vmatpush1.msra.mxu0 0.0
  %1960 = vmatprep.subr.mxu0 0.0
  %1961 = vmatpush1.msra.mxu0 0.0
  %1962 = vmatprep.subr.mxu0 0.0
  %1963 = vmatpush1.msra.mxu0 0.0
  %1964 = vmatprep.subr.mxu0 0.0
  %1965 = vmatpush1.msra.mxu0 0.0
  %1966 = vmatprep.subr.mxu0 0.0
  %1967 = vmatpush1.msra.mxu0 0.0
  %1968 = vmatprep.subr.mxu0 0.0
  %1969 = vmatpush1.msra.mxu0 %v1936
  %1970 = vmatprep.subr.mxu0 0.0
  %1971 = vmatpush2.msra.mxu0 0.0
  %1972 = vmatprep.subr.mxu0 0.0
  %1973 = vmatpush2.msra.mxu0 0.0
  %1974 = vmatprep.subr.mxu0 0.0
  %1975 = vmatpush2.msra.mxu0 0.0
  %1976 = vmatprep.subr.mxu0 0.0
  %1977 = vmatpush2.msra.mxu0 0.0
  %1978 = vmatprep.subr.mxu0 0.0
  %1979 = vmatpush2.msra.mxu0 0.0
  %1980 = vmatprep.subr.mxu0 0.0
  %1981 = vmatpush2.msra.mxu0 0.0
  %1982 = vmatprep.subr.mxu0 0.0
  %1983 = vmatpush2.msra.mxu0 0.0
  %1984 = vmatprep.subr.mxu0 0.0
  %1985 = vmatpush2.msra.mxu0 0.0
  %1986 = vmatprep.subr.mxu0 0.0
  %1987 = vmatpush2.msra.mxu0 0.0
  %1988 = vmatprep.subr.mxu0 0.0
  %1989 = vmatpush2.msra.mxu0 0.0
  %1990 = vmatprep.subr.mxu0 0.0
  %1991 = vmatpush2.msra.mxu0 0.0
  %1992 = vmatprep.subr.mxu0 0.0
  %1993 = vmatpush2.msra.mxu0 0.0
  %1994 = vmatprep.subr.mxu0 0.0
  %1995 = vmatpush2.msra.mxu0 0.0
  %1996 = vmatprep.subr.mxu0 0.0
  %1997 = vmatpush2.msra.mxu0 0.0
  %1998 = vmatprep.subr.mxu0 0.0
  %1999 = vmatpush2.msra.mxu0 0.0
  %2000 = vmatprep.subr.mxu0 0.0
  %2001 = vmatpush2.msra.mxu0 0.0
  %2002 = vmatprep.mubr.f32.mxu0 0.0
  %2003 = vmatmul.mubr.f32.gmra.mxu0 %v1934
  %v2004 = vpop.f32.mrf.mxu0
  %v2005 = vadd.f32 0.0, %v2004
  %v2006 = vpop.f32.mrf.mxu0
  %2007 = vdwg.mxu0
  %v2008 = vcombine.low %v709, %v723
  %v2009 = vcombine.low %v725, %v727
  %v2011 = vunpack.c.l.s4 1966171168
  %v2012 = vunpack.c.0.s8 %v2011
  %v2013 = vlaneseq
  %v2014 = vshrl.u32 %v2013, 7
  %v2015 = vsub.s32 %v2012, %v2014
  %v2016 = vrot.slane %v2008, %v2015
  %v2018 = vunpack.c.l.s4 1966171168
  %v2019 = vunpack.c.0.s8 %v2018
  %v2020 = vlaneseq
  %v2021 = vshrl.u32 %v2020, 7
  %v2022 = vsub.s32 %v2019, %v2021
  %v2023 = vrot.slane %v2009, %v2022
  %v2025 = vunpack.c.l.s4 1966171168
  %v2026 = vunpack.c.0.s8 %v2025
  %v2027 = vlaneseq
  %v2028 = vshrl.u32 %v2027, 7
  %v2029 = vsub.s32 %v2026, %v2028
  %v2030 = vrot.slane %v751, %v2029
  %v2031 = vcombine.low %v2016, %v2023
  %v2033 = vunpack.c.l.s4 1966171168
  %v2034 = vunpack.c.0.s8 %v2033
  %v2035 = vlaneseq
  %v2036 = vshrl.u32 %v2035, 7
  %v2037 = vsub.s32 %v2034, %v2036
  %v2038 = vrot.slane %v2031, %v2037
  %v2040 = vunpack.c.l.s4 1966171168
  %v2041 = vunpack.c.0.s8 %v2040
  %v2042 = vlaneseq
  %v2043 = vshrl.u32 %v2042, 7
  %v2044 = vsub.s32 %v2041, %v2043
  %v2045 = vrot.slane %v2030, %v2044
  %v2046 = vcombine.low %v2038, %v2045
  %v2048 = vsel %vm814, %v1549, 0
  %v2050 = vsel %vm1593, %v2046, 0
  %2052 = vmatprep.subr.mxu0 0.0
  %2053 = vmatpush1.msra.mxu0 0.0
  %2054 = vmatprep.subr.mxu0 0.0
  %2055 = vmatpush1.msra.mxu0 0.0
  %2056 = vmatprep.subr.mxu0 0.0
  %2057 = vmatpush1.msra.mxu0 0.0
  %2058 = vmatprep.subr.mxu0 0.0
  %2059 = vmatpush1.msra.mxu0 0.0
  %2060 = vmatprep.subr.mxu0 0.0
  %2061 = vmatpush1.msra.mxu0 0.0
  %2062 = vmatprep.subr.mxu0 0.0
  %2063 = vmatpush1.msra.mxu0 0.0
  %2064 = vmatprep.subr.mxu0 0.0
  %2065 = vmatpush1.msra.mxu0 0.0
  %2066 = vmatprep.subr.mxu0 0.0
  %2067 = vmatpush1.msra.mxu0 0.0
  %2068 = vmatprep.subr.mxu0 0.0
  %2069 = vmatpush1.msra.mxu0 0.0
  %2070 = vmatprep.subr.mxu0 0.0
  %2071 = vmatpush1.msra.mxu0 0.0
  %2072 = vmatprep.subr.mxu0 0.0
  %2073 = vmatpush1.msra.mxu0 0.0
  %2074 = vmatprep.subr.mxu0 0.0
  %2075 = vmatpush1.msra.mxu0 0.0
  %2076 = vmatprep.subr.mxu0 0.0
  %2077 = vmatpush1.msra.mxu0 0.0
  %2078 = vmatprep.subr.mxu0 0.0
  %2079 = vmatpush1.msra.mxu0 0.0
  %2080 = vmatprep.subr.mxu0 0.0
  %2081 = vmatpush1.msra.mxu0 0.0
  %2082 = vmatprep.subr.mxu0 0.0
  %2083 = vmatpush1.msra.mxu0 %v2050
  %2084 = vmatprep.subr.mxu0 0.0
  %2085 = vmatpush2.msra.mxu0 0.0
  %2086 = vmatprep.subr.mxu0 0.0
  %2087 = vmatpush2.msra.mxu0 0.0
  %2088 = vmatprep.subr.mxu0 0.0
  %2089 = vmatpush2.msra.mxu0 0.0
  %2090 = vmatprep.subr.mxu0 0.0
  %2091 = vmatpush2.msra.mxu0 0.0
  %2092 = vmatprep.subr.mxu0 0.0
  %2093 = vmatpush2.msra.mxu0 0.0
  %2094 = vmatprep.subr.mxu0 0.0
  %2095 = vmatpush2.msra.mxu0 0.0
  %2096 = vmatprep.subr.mxu0 0.0
  %2097 = vmatpush2.msra.mxu0 0.0
  %2098 = vmatprep.subr.mxu0 0.0
  %2099 = vmatpush2.msra.mxu0 0.0
  %2100 = vmatprep.subr.mxu0 0.0
  %2101 = vmatpush2.msra.mxu0 0.0
  %2102 = vmatprep.subr.mxu0 0.0
  %2103 = vmatpush2.msra.mxu0 0.0
  %2104 = vmatprep.subr.mxu0 0.0
  %2105 = vmatpush2.msra.mxu0 0.0
  %2106 = vmatprep.subr.mxu0 0.0
  %2107 = vmatpush2.msra.mxu0 0.0
  %2108 = vmatprep.subr.mxu0 0.0
  %2109 = vmatpush2.msra.mxu0 0.0
  %2110 = vmatprep.subr.mxu0 0.0
  %2111 = vmatpush2.msra.mxu0 0.0
  %2112 = vmatprep.subr.mxu0 0.0
  %2113 = vmatpush2.msra.mxu0 0.0
  %2114 = vmatprep.subr.mxu0 0.0
  %2115 = vmatpush2.msra.mxu0 0.0
  %2116 = vmatprep.mubr.f32.mxu0 0.0
  %2117 = vmatmul.mubr.f32.gmra.mxu0 %v2048
  %v2118 = vpop.f32.mrf.mxu0
  %v2119 = vadd.f32 0.0, %v2118
  %v2120 = vpop.f32.mrf.mxu0
  %2121 = vdwg.mxu0
  %v2122 = vcombine.low %v765, %v773
  %v2123 = vcombine.low %v774, %v758
  %v2125 = vunpack.c.l.s4 1966171168
  %v2126 = vunpack.c.0.s8 %v2125
  %v2127 = vlaneseq
  %v2128 = vshrl.u32 %v2127, 7
  %v2129 = vsub.s32 %v2126, %v2128
  %v2130 = vrot.slane %v2122, %v2129
  %v2132 = vunpack.c.l.s4 1966171168
  %v2133 = vunpack.c.0.s8 %v2132
  %v2134 = vlaneseq
  %v2135 = vshrl.u32 %v2134, 7
  %v2136 = vsub.s32 %v2133, %v2135
  %v2137 = vrot.slane %v2123, %v2136
  %v2139 = vunpack.c.l.s4 1966171168
  %v2140 = vunpack.c.0.s8 %v2139
  %v2141 = vlaneseq
  %v2142 = vshrl.u32 %v2141, 7
  %v2143 = vsub.s32 %v2140, %v2142
  %v2144 = vrot.slane %v772, %v2143
  %v2145 = vcombine.low %v2130, %v2137
  %v2147 = vunpack.c.l.s4 1966171168
  %v2148 = vunpack.c.0.s8 %v2147
  %v2149 = vlaneseq
  %v2150 = vshrl.u32 %v2149, 7
  %v2151 = vsub.s32 %v2148, %v2150
  %v2152 = vrot.slane %v2145, %v2151
  %v2154 = vunpack.c.l.s4 1966171168
  %v2155 = vunpack.c.0.s8 %v2154
  %v2156 = vlaneseq
  %v2157 = vshrl.u32 %v2156, 7
  %v2158 = vsub.s32 %v2155, %v2157
  %v2159 = vrot.slane %v2144, %v2158
  %v2160 = vcombine.low %v2152, %v2159
  %v2162 = vsel %vm814, %v1550, 0
  %v2164 = vsel %vm1593, %v2160, 0
  %2166 = vmatprep.subr.mxu0 0.0
  %2167 = vmatpush1.msra.mxu0 0.0
  %2168 = vmatprep.subr.mxu0 0.0
  %2169 = vmatpush1.msra.mxu0 0.0
  %2170 = vmatprep.subr.mxu0 0.0
  %2171 = vmatpush1.msra.mxu0 0.0
  %2172 = vmatprep.subr.mxu0 0.0
  %2173 = vmatpush1.msra.mxu0 0.0
  %2174 = vmatprep.subr.mxu0 0.0
  %2175 = vmatpush1.msra.mxu0 0.0
  %2176 = vmatprep.subr.mxu0 0.0
  %2177 = vmatpush1.msra.mxu0 0.0
  %2178 = vmatprep.subr.mxu0 0.0
  %2179 = vmatpush1.msra.mxu0 0.0
  %2180 = vmatprep.subr.mxu0 0.0
  %2181 = vmatpush1.msra.mxu0 0.0
  %2182 = vmatprep.subr.mxu0 0.0
  %2183 = vmatpush1.msra.mxu0 0.0
  %2184 = vmatprep.subr.mxu0 0.0
  %2185 = vmatpush1.msra.mxu0 0.0
  %2186 = vmatprep.subr.mxu0 0.0
  %2187 = vmatpush1.msra.mxu0 0.0
  %2188 = vmatprep.subr.mxu0 0.0
  %2189 = vmatpush1.msra.mxu0 0.0
  %2190 = vmatprep.subr.mxu0 0.0
  %2191 = vmatpush1.msra.mxu0 0.0
  %2192 = vmatprep.subr.mxu0 0.0
  %2193 = vmatpush1.msra.mxu0 0.0
  %2194 = vmatprep.subr.mxu0 0.0
  %2195 = vmatpush1.msra.mxu0 0.0
  %2196 = vmatprep.subr.mxu0 0.0
  %2197 = vmatpush1.msra.mxu0 %v2164
  %2198 = vmatprep.subr.mxu0 0.0
  %2199 = vmatpush2.msra.mxu0 0.0
  %2200 = vmatprep.subr.mxu0 0.0
  %2201 = vmatpush2.msra.mxu0 0.0
  %2202 = vmatprep.subr.mxu0 0.0
  %2203 = vmatpush2.msra.mxu0 0.0
  %2204 = vmatprep.subr.mxu0 0.0
  %2205 = vmatpush2.msra.mxu0 0.0
  %2206 = vmatprep.subr.mxu0 0.0
  %2207 = vmatpush2.msra.mxu0 0.0
  %2208 = vmatprep.subr.mxu0 0.0
  %2209 = vmatpush2.msra.mxu0 0.0
  %2210 = vmatprep.subr.mxu0 0.0
  %2211 = vmatpush2.msra.mxu0 0.0
  %2212 = vmatprep.subr.mxu0 0.0
  %2213 = vmatpush2.msra.mxu0 0.0
  %2214 = vmatprep.subr.mxu0 0.0
  %2215 = vmatpush2.msra.mxu0 0.0
  %2216 = vmatprep.subr.mxu0 0.0
  %2217 = vmatpush2.msra.mxu0 0.0
  %2218 = vmatprep.subr.mxu0 0.0
  %2219 = vmatpush2.msra.mxu0 0.0
  %2220 = vmatprep.subr.mxu0 0.0
  %2221 = vmatpush2.msra.mxu0 0.0
  %2222 = vmatprep.subr.mxu0 0.0
  %2223 = vmatpush2.msra.mxu0 0.0
  %2224 = vmatprep.subr.mxu0 0.0
  %2225 = vmatpush2.msra.mxu0 0.0
  %2226 = vmatprep.subr.mxu0 0.0
  %2227 = vmatpush2.msra.mxu0 0.0
  %2228 = vmatprep.subr.mxu0 0.0
  %2229 = vmatpush2.msra.mxu0 0.0
  %2230 = vmatprep.mubr.f32.mxu0 0.0
  %2231 = vmatmul.mubr.f32.gmra.mxu0 %v2162
  %v2232 = vpop.f32.mrf.mxu0
  %v2233 = vadd.f32 0.0, %v2232
  %v2234 = vpop.f32.mrf.mxu0
  %2235 = vdwg.mxu0
  %v2236 = vld [vmem:[%s10] sm:$0x3f]
  %v2237 = vld [vmem:[%s11] sm:$0x1]
  %v2239 = vlaneseq
  %v2240 = vshrl.u32 %v2239, 7
  %v2241 = vsub.s32 0, %v2240
  %v2242 = vrot.slane %v2237, %v2241
  %v2250 = vcombine.low %v1663, %v1777
  %v2251 = vcombine.low %v1891, %v2005
  %v2252 = vcombine.low %v2119, %v2233
  %vm2253 = vcmask 48128
  %v2254 = vsel %vm2253, %v2250, 0
  %v2256 = vsel %vm2253, %v2251, 0
  %v2258 = vsel %vm2253, %v2252, 0
  %vm2260 = vcmask 1045504
  %v2262 = vsel %vm2260, %v2236, 0
  %2264 = vmatprep.subr.mxu0 0.0
  %2265 = vmatpush1.msra.mxu0 0.0
  %2266 = vmatprep.subr.mxu0 0.0
  %2267 = vmatpush1.msra.mxu0 0.0
  %2268 = vmatprep.subr.mxu0 0.0
  %2269 = vmatpush1.msra.mxu0 0.0
  %2270 = vmatprep.subr.mxu0 0.0
  %2271 = vmatpush1.msra.mxu0 0.0
  %2272 = vmatprep.subr.mxu0 0.0
  %2273 = vmatpush1.msra.mxu0 0.0
  %2274 = vmatprep.subr.mxu0 0.0
  %2275 = vmatpush1.msra.mxu0 0.0
  %2276 = vmatprep.subr.mxu0 0.0
  %2277 = vmatpush1.msra.mxu0 0.0
  %2278 = vmatprep.subr.mxu0 0.0
  %2279 = vmatpush1.msra.mxu0 0.0
  %2280 = vmatprep.subr.mxu0 0.0
  %2281 = vmatpush1.msra.mxu0 0.0
  %2282 = vmatprep.subr.mxu0 0.0
  %2283 = vmatpush1.msra.mxu0 0.0
  %2284 = vmatprep.subr.mxu0 0.0
  %2285 = vmatpush1.msra.mxu0 0.0
  %2286 = vmatprep.subr.mxu0 0.0
  %2287 = vmatpush1.msra.mxu0 0.0
  %2288 = vmatprep.subr.mxu0 0.0
  %2289 = vmatpush1.msra.mxu0 0.0
  %2290 = vmatprep.subr.mxu0 0.0
  %2291 = vmatpush1.msra.mxu0 0.0
  %2292 = vmatprep.subr.mxu0 0.0
  %2293 = vmatpush1.msra.mxu0 0.0
  %2294 = vmatprep.subr.mxu0 0.0
  %2295 = vmatpush1.msra.mxu0 %v2262
  %2296 = vmatprep.subr.mxu0 0.0
  %2297 = vmatpush2.msra.mxu0 0.0
  %2298 = vmatprep.subr.mxu0 0.0
  %2299 = vmatpush2.msra.mxu0 0.0
  %2300 = vmatprep.subr.mxu0 0.0
  %2301 = vmatpush2.msra.mxu0 0.0
  %2302 = vmatprep.subr.mxu0 0.0
  %2303 = vmatpush2.msra.mxu0 0.0
  %2304 = vmatprep.subr.mxu0 0.0
  %2305 = vmatpush2.msra.mxu0 0.0
  %2306 = vmatprep.subr.mxu0 0.0
  %2307 = vmatpush2.msra.mxu0 0.0
  %2308 = vmatprep.subr.mxu0 0.0
  %2309 = vmatpush2.msra.mxu0 0.0
  %2310 = vmatprep.subr.mxu0 0.0
  %2311 = vmatpush2.msra.mxu0 0.0
  %2312 = vmatprep.subr.mxu0 0.0
  %2313 = vmatpush2.msra.mxu0 0.0
  %2314 = vmatprep.subr.mxu0 0.0
  %2315 = vmatpush2.msra.mxu0 0.0
  %2316 = vmatprep.subr.mxu0 0.0
  %2317 = vmatpush2.msra.mxu0 0.0
  %2318 = vmatprep.subr.mxu0 0.0
  %2319 = vmatpush2.msra.mxu0 0.0
  %2320 = vmatprep.subr.mxu0 0.0
  %2321 = vmatpush2.msra.mxu0 0.0
  %2322 = vmatprep.subr.mxu0 0.0
  %2323 = vmatpush2.msra.mxu0 0.0
  %2324 = vmatprep.subr.mxu0 0.0
  %2325 = vmatpush2.msra.mxu0 0.0
  %2326 = vmatprep.subr.mxu0 0.0
  %2327 = vmatpush2.msra.mxu0 0.0
  %2328 = vmatprep.mubr.f32.mxu0 0.0
  %2329 = vmatmul.mubr.f32.gmra.mxu0 %v2254
  %v2330 = vpop.f32.mrf.mxu0
  %v2331 = vadd.f32 %v2242, %v2330
  %v2332 = vpop.f32.mrf.mxu0
  %2333 = vmatprep.mubr.f32.mxu0 0.0
  %2334 = vmatmul.mubr.f32.gmra.mxu0 %v2256
  %v2335 = vpop.f32.mrf.mxu0
  %v2336 = vadd.f32 %v2242, %v2335
  %v2337 = vpop.f32.mrf.mxu0
  %2338 = vmatprep.mubr.f32.mxu0 0.0
  %2339 = vmatmul.mubr.f32.gmra.mxu0 %v2258
  %v2340 = vpop.f32.mrf.mxu0
  %v2341 = vadd.f32 %v2242, %v2340
  %v2342 = vpop.f32.mrf.mxu0
  %2343 = vdwg.mxu0
  %2344 = vst.msk [vmem:[%s12] sm:$0xff] %vm53, %v2331
  %2345 = vst.msk [vmem:[%s12 + $0x8] sm:$0xff] %vm53, %v2336
  %2346 = vst.msk [vmem:[%s12 + $0x10] sm:$0xff] %vm53, %v2341
  // Predicated region
  $region50: #{tpu_custom_call.1} parent=0 // pred_check
    _
  $region51: #{tpu_custom_call.1} parent=0 // pred_check_branch
    %2348 = sbr.rel (0) target = $region53
  $region52: #{tpu_custom_call.1} parent=0 // pred_region
    _
  $region53: #{tpu_custom_call.1} parent=0 // pred_fallthru
    _
  // Predicated region
  $region54: #{tpu_custom_call.1} parent=0 // pred_check
    _
  $region55: #{tpu_custom_call.1} parent=0 // pred_check_branch
    %2350 = sbr.rel (0) target = $region57
  $region56: #{tpu_custom_call.1} parent=0 // pred_region
    _
  $region57: #{tpu_custom_call.1} parent=0 // pred_fallthru
    _

</llo_original>
